<compile_context>
chip_gen: v6e
topology: v6e:2x2x1
jax: 0.10.0
libtpu: 0.0.40
codegen_flags: <defaults>
</compile_context>

<pallas_src>
import math
import functools

import jax
import jax.numpy as jnp
from jax.experimental import pallas as pl
from jax.experimental.pallas import tpu as pltpu


# MXU input dtype. Accumulation / softmax / bias-add remain float32.
COMPUTE_DTYPE = jnp.bfloat16


def _pick_tile(dim, target, align):
    """Largest multiple of `align` that divides `dim` and is <= target, else full dim."""
    if dim <= target:
        return dim
    t = (target // align) * align
    while t >= align:
        if dim % t == 0:
            return t
        t -= align
    return dim


# ----------------------------------------------------------------------------
# Tiled linear kernel:  y = x @ w + b      (w already transposed to (K, N))
# ----------------------------------------------------------------------------
def _linear_kernel(x_ref, w_ref, b_ref, o_ref, acc_ref):
    @pl.when(pl.program_id(2) == 0)
    def _():
        acc_ref[...] = jnp.zeros_like(acc_ref)

    acc_ref[...] += jnp.dot(x_ref[...], w_ref[...],
                            preferred_element_type=jnp.float32)

    @pl.when(pl.program_id(2) == pl.num_programs(2) - 1)
    def _():
        y = acc_ref[...] + b_ref[...].astype(jnp.float32)   # (tm, tn) + (1, tn)
        o_ref[...] = y.astype(o_ref.dtype)


def pallas_linear(x2d, w, b, *, out_dtype=None, tm=256, tn=256, tk=512):
    """x2d: (M, K), w: (K, N), b: (1, N) -> (M, N)."""
    M, K = x2d.shape
    K2, N = w.shape
    assert K == K2
    out_dtype = out_dtype or x2d.dtype

    tm = _pick_tile(M, tm, 8)
    tn = _pick_tile(N, tn, 128)
    tk = _pick_tile(K, tk, 128)
    grid = (M // tm, N // tn, K // tk)

    bytes_accessed = (x2d.size * x2d.dtype.itemsize
                      + w.size * w.dtype.itemsize
                      + M * N * jnp.dtype(out_dtype).itemsize)
    cost = pl.CostEstimate(flops=2 * M * N * K, transcendentals=0,
                           bytes_accessed=bytes_accessed)

    return pl.pallas_call(
        _linear_kernel,
        out_shape=jax.ShapeDtypeStruct((M, N), out_dtype),
        grid_spec=pltpu.PrefetchScalarGridSpec(
            num_scalar_prefetch=0,
            grid=grid,
            in_specs=[
                pl.BlockSpec((tm, tk), lambda i, j, k: (i, k)),
                pl.BlockSpec((tk, tn), lambda i, j, k: (k, j)),
                pl.BlockSpec((1, tn), lambda i, j, k: (0, j)),
            ],
            out_specs=pl.BlockSpec((tm, tn), lambda i, j, k: (i, j)),
            scratch_shapes=[pltpu.VMEM((tm, tn), jnp.float32)],
        ),
        compiler_params=pltpu.CompilerParams(
            dimension_semantics=("parallel", "parallel", "arbitrary")),
        cost_estimate=cost,
    )(x2d, w, b)


# ----------------------------------------------------------------------------
# Flash-style scaled-dot-product attention (online softmax, heads batched)
# ----------------------------------------------------------------------------
def _flash_sdpa_kernel(q_ref, k_ref, v_ref, o_ref, m_scr, l_scr, acc_scr, *,
                       scale):
    kv_idx = pl.program_id(2)

    @pl.when(kv_idx == 0)
    def _():
        m_scr[...] = jnp.full_like(m_scr, -jnp.inf)
        l_scr[...] = jnp.zeros_like(l_scr)
        acc_scr[...] = jnp.zeros_like(acc_scr)

    q = q_ref[0] * scale                 # (H, tq, D)  pre-scale q (O(S*D), not O(S^2))
    k = k_ref[0]                         # (H, tk, D)
    v = v_ref[0]                         # (H, tk, D)

    s = jnp.einsum('hqd,hkd->hqk', q, k,
                   preferred_element_type=jnp.float32)            # (H, tq, tk) f32

    m_prev = m_scr[...]
    m_new = jnp.maximum(m_prev, s.max(axis=-1, keepdims=True))
    alpha = jnp.exp(m_prev - m_new)
    p = jnp.exp(s - m_new)
    l_scr[...] = alpha * l_scr[...] + p.sum(axis=-1, keepdims=True)
    acc_scr[...] = alpha * acc_scr[...] + jnp.einsum(
        'hqk,hkd->hqd', p.astype(v.dtype), v,
        preferred_element_type=jnp.float32)
    m_scr[...] = m_new

    @pl.when(kv_idx == pl.num_programs(2) - 1)
    def _():
        out = acc_scr[...] * pl.reciprocal(l_scr[...], approx=True)
        o_ref[0] = out.astype(o_ref.dtype)


def pallas_sdpa(q, k, v, *, tq=128, tk=128):
    """q, k, v: (B, H, S, D) -> (B, H, S, D)."""
    B, H, S, D = q.shape
    tq = _pick_tile(S, tq, 8)
    tk = _pick_tile(S, tk, 8)
    grid = (B, S // tq, S // tk)
    scale = 1.0 / math.sqrt(D)

    cost = pl.CostEstimate(flops=4 * B * H * S * S * D,
                           transcendentals=B * H * S * S,
                           bytes_accessed=4 * B * H * S * D * q.dtype.itemsize)

    q_spec = pl.BlockSpec((1, H, tq, D), lambda b, qi, ki: (b, 0, qi, 0))
    kv_spec = pl.BlockSpec((1, H, tk, D), lambda b, qi, ki: (b, 0, ki, 0))

    return pl.pallas_call(
        functools.partial(_flash_sdpa_kernel, scale=scale),
        out_shape=jax.ShapeDtypeStruct((B, H, S, D), q.dtype),
        grid_spec=pltpu.PrefetchScalarGridSpec(
            num_scalar_prefetch=0,
            grid=grid,
            in_specs=[q_spec, kv_spec, kv_spec],
            out_specs=pl.BlockSpec((1, H, tq, D), lambda b, qi, ki: (b, 0, qi, 0)),
            scratch_shapes=[
                pltpu.VMEM((H, tq, 1), jnp.float32),   # m (running max)
                pltpu.VMEM((H, tq, 1), jnp.float32),   # l (running denom)
                pltpu.VMEM((H, tq, D), jnp.float32),   # acc
            ],
        ),
        compiler_params=pltpu.CompilerParams(
            dimension_semantics=("parallel", "parallel", "arbitrary")),
        cost_estimate=cost,
    )(q, k, v)


# ----------------------------------------------------------------------------
# MultiHeadAttention forward
# ----------------------------------------------------------------------------
def multi_head_attention(x, params, num_heads, compute_dtype=COMPUTE_DTYPE):
    B, S, d_model = x.shape
    assert d_model % num_heads == 0
    depth = d_model // num_heads

    x2d = x.reshape(B * S, d_model).astype(compute_dtype)

    # Fused Q/K/V projection: one matmul of width 3*d_model, then slice.
    qkv = pallas_linear(x2d, params["wqkv_w"], params["wqkv_b"],
                        out_dtype=compute_dtype)                  # (B*S, 3*d_model)
    q2d, k2d, v2d = jnp.split(qkv, 3, axis=-1)

    def split_heads(y2d):
        # (B*S, d_model) -> (B, H, S, depth)   (matches view + permute(0,2,1,3))
        return y2d.reshape(B, S, num_heads, depth).transpose(0, 2, 1, 3)

    Q, K, V = split_heads(q2d), split_heads(k2d), split_heads(v2d)

    attn = pallas_sdpa(Q, K, V)                                   # (B, H, S, depth)
    attn2d = attn.transpose(0, 2, 1, 3).reshape(B * S, d_model)

    out = pallas_linear(attn2d.astype(compute_dtype),
                        params["dense_w"], params["dense_b"],
                        out_dtype=x.dtype)
    return out.reshape(B, S, d_model)


# ----------------------------------------------------------------------------
# Parameters: PyTorch-layout init, then TPU-friendly preparation
# ----------------------------------------------------------------------------
def init_params(key, d_model):
    """PyTorch nn.Linear default init: U(-1/sqrt(in), +1/sqrt(in)); weight (N, K)."""
    names = ["wq", "wk", "wv", "dense"]
    params = {}
    bound = 1.0 / math.sqrt(d_model)
    keys = jax.random.split(key, 2 * len(names))
    for i, name in enumerate(names):
        wkey, bkey = keys[2 * i], keys[2 * i + 1]
        params[f"{name}_w"] = jax.random.uniform(
            wkey, (d_model, d_model), jnp.float32, -bound, bound)
        params[f"{name}_b"] = jax.random.uniform(
            bkey, (d_model,), jnp.float32, -bound, bound)
    return params


def prepare_params(torch_params, compute_dtype=COMPUTE_DTYPE):
    """Transpose (N,K)->(K,N), fuse QKV weights, cast matmul operands to bf16."""
    wq, wk, wv = (torch_params[f"{n}_w"] for n in ("wq", "wk", "wv"))
    bq, bk, bv = (torch_params[f"{n}_b"] for n in ("wq", "wk", "wv"))
    wqkv = jnp.concatenate([wq.T, wk.T, wv.T], axis=1).astype(compute_dtype)
    bqkv = jnp.concatenate([bq, bk, bv]).reshape(1, -1).astype(jnp.float32)
    return {
        "wqkv_w": wqkv,                                              # (K, 3N)
        "wqkv_b": bqkv,                                              # (1, 3N)
        "dense_w": torch_params["dense_w"].T.astype(compute_dtype),  # (K, N)
        "dense_b": torch_params["dense_b"].reshape(1, -1).astype(jnp.float32),
    }


if __name__ == "__main__":
    d_model = 32
    num_heads = 4
    batch = 2
    seq = 8

    root = jax.random.PRNGKey(0)
    pkey, xkey = jax.random.split(root)
    torch_style_params = init_params(pkey, d_model)
    params = prepare_params(torch_style_params)
    x = jax.random.normal(xkey, (batch, seq, d_model), jnp.float32)

    fwd = jax.jit(functools.partial(multi_head_attention, num_heads=num_heads))
    out = fwd(x, params)
    jax.block_until_ready(out)

    assert out.shape == (batch, seq, d_model)
    assert out.dtype == jnp.float32
    assert bool(jnp.all(jnp.isfinite(out)))
    print("KERNEL_OK")
</pallas_src>

<mosaic_0001>
module attributes {stable_mosaic.version = 11 : i64} {
  func.func @_linear_kernel(%arg0: i32, %arg1: i32, %arg2: i32, %arg3: memref<16x32xbf16, #tpu.memory_space<vmem>>, %arg4: memref<32x96xbf16, #tpu.memory_space<vmem>>, %arg5: memref<1x96xf32, #tpu.memory_space<vmem>>, %arg6: memref<16x96xbf16, #tpu.memory_space<vmem>>, %arg7: memref<16x96xf32, #tpu.memory_space<vmem>>) attributes {dimension_semantics = [#tpu.dimension_semantics<parallel>, #tpu.dimension_semantics<parallel>, #tpu.dimension_semantics<arbitrary>], iteration_bounds = array<i64: 1, 1, 1>, scalar_prefetch = 0 : i64, scratch_operands = 1 : i64, tpu.core_type = #tpu.core_type<tc>, window_params = [{transform_indices = @transform_0, window_bounds = array<i64: 16, 32>}, {transform_indices = @transform_1, window_bounds = array<i64: 32, 96>}, {transform_indices = @transform_2, window_bounds = array<i64: 1, 96>}, {transform_indices = @transform_3, window_bounds = array<i64: 16, 96>}]} {
    %c0_i32 = arith.constant 0 : i32
    %0 = arith.cmpi eq, %arg2, %c0_i32 : i32
    %1 = arith.extui %0 : i1 to i32
    %c0_i32_0 = arith.constant 0 : i32
    %2 = arith.cmpi ne, %1, %c0_i32_0 : i32
    scf.if %2 {
      %cst_10 = arith.constant 0.000000e+00 : f32
      %12 = vector.broadcast %cst_10 : f32 to vector<16x96xf32>
      %c0_11 = arith.constant 0 : index
      %c0_12 = arith.constant 0 : index
      %13 = vector.load %arg7[%c0_11, %c0_12] : memref<16x96xf32, #tpu.memory_space<vmem>>, vector<16x96xf32>
      tpu.vector_store %arg7[%c0_11, %c0_12], %12 {strides = array<i32>} : memref<16x96xf32, #tpu.memory_space<vmem>>, vector<16x96xf32>,
    } else {
    }
    %c0 = arith.constant 0 : index
    %c0_1 = arith.constant 0 : index
    %3 = vector.load %arg7[%c0, %c0_1] : memref<16x96xf32, #tpu.memory_space<vmem>>, vector<16x96xf32>
    %c0_2 = arith.constant 0 : index
    %c0_3 = arith.constant 0 : index
    %4 = vector.load %arg3[%c0_2, %c0_3] : memref<16x32xbf16, #tpu.memory_space<vmem>>, vector<16x32xbf16>
    %c0_4 = arith.constant 0 : index
    %c0_5 = arith.constant 0 : index
    %5 = vector.load %arg4[%c0_4, %c0_5] : memref<32x96xbf16, #tpu.memory_space<vmem>>, vector<32x96xbf16>
    %cst = arith.constant dense<0.000000e+00> : vector<16x96xf32>
    %6 = tpu.matmul %4, %5, %cst {dimension_numbers = #tpu.dot_dimension_numbers<[1], [0], [0], [1], [0, 0, 1, 1], [], []>} : vector<16x32xbf16>, vector<32x96xbf16>, vector<16x96xf32> -> vector<16x96xf32>
    %7 = arith.addf %3, %6 : vector<16x96xf32>
    %c0_6 = arith.constant 0 : index
    %c0_7 = arith.constant 0 : index
    %8 = vector.load %arg7[%c0_6, %c0_7] : memref<16x96xf32, #tpu.memory_space<vmem>>, vector<16x96xf32>
    tpu.vector_store %arg7[%c0_6, %c0_7], %7 {strides = array<i32>} : memref<16x96xf32, #tpu.memory_space<vmem>>, vector<16x96xf32>,
    %c0_i32_8 = arith.constant 0 : i32
    %9 = arith.cmpi eq, %arg2, %c0_i32_8 : i32
    %10 = arith.extui %9 : i1 to i32
    %c0_i32_9 = arith.constant 0 : i32
    %11 = arith.cmpi ne, %10, %c0_i32_9 : i32
    scf.if %11 {
      %c0_10 = arith.constant 0 : index
      %c0_11 = arith.constant 0 : index
      %12 = vector.load %arg7[%c0_10, %c0_11] : memref<16x96xf32, #tpu.memory_space<vmem>>, vector<16x96xf32>
      %c0_12 = arith.constant 0 : index
      %c0_13 = arith.constant 0 : index
      %13 = vector.load %arg5[%c0_12, %c0_13] : memref<1x96xf32, #tpu.memory_space<vmem>>, vector<1x96xf32>
      %14 = vector.broadcast %13 : vector<1x96xf32> to vector<16x96xf32>
      %15 = arith.addf %12, %14 : vector<16x96xf32>
      %16 = arith.truncf %15 : vector<16x96xf32> to vector<16x96xbf16>
      %c0_14 = arith.constant 0 : index
      %c0_15 = arith.constant 0 : index
      %17 = vector.load %arg6[%c0_14, %c0_15] : memref<16x96xbf16, #tpu.memory_space<vmem>>, vector<16x96xbf16>
      tpu.vector_store %arg6[%c0_14, %c0_15], %16 {strides = array<i32>} : memref<16x96xbf16, #tpu.memory_space<vmem>>, vector<16x96xbf16>,
    } else {
    }
    return
  }
  func.func @transform_0(%arg0: i32, %arg1: i32, %arg2: i32) -> (i32, i32) {
    %c0_i32 = arith.constant 0 : i32
    return %arg0, %arg2 : i32, i32
  }
  func.func @transform_1(%arg0: i32, %arg1: i32, %arg2: i32) -> (i32, i32) {
    %c0_i32 = arith.constant 0 : i32
    return %arg2, %arg1 : i32, i32
  }
  func.func @transform_2(%arg0: i32, %arg1: i32, %arg2: i32) -> (i32, i32) {
    %c0_i32 = arith.constant 0 : i32
    %c0_i32_0 = arith.constant 0 : i32
    return %c0_i32, %arg1 : i32, i32
  }
  func.func @transform_3(%arg0: i32, %arg1: i32, %arg2: i32) -> (i32, i32) {
    %c0_i32 = arith.constant 0 : i32
    return %arg0, %arg1 : i32, i32
  }
}

module attributes {stable_mosaic.version = 11 : i64} {
  func.func @_flash_sdpa_kernel(%arg0: i32, %arg1: i32, %arg2: i32, %arg3: memref<1x4x8x8xbf16, #tpu.memory_space<vmem>>, %arg4: memref<1x4x8x8xbf16, #tpu.memory_space<vmem>>, %arg5: memref<1x4x8x8xbf16, #tpu.memory_space<vmem>>, %arg6: memref<1x4x8x8xbf16, #tpu.memory_space<vmem>>, %arg7: memref<4x8x1xf32, #tpu.memory_space<vmem>>, %arg8: memref<4x8x1xf32, #tpu.memory_space<vmem>>, %arg9: memref<4x8x8xf32, #tpu.memory_space<vmem>>) attributes {dimension_semantics = [#tpu.dimension_semantics<parallel>, #tpu.dimension_semantics<parallel>, #tpu.dimension_semantics<arbitrary>], iteration_bounds = array<i64: 2, 1, 1>, scalar_prefetch = 0 : i64, scratch_operands = 3 : i64, tpu.core_type = #tpu.core_type<tc>, window_params = [{transform_indices = @transform_0, window_bounds = array<i64: 1, 4, 8, 8>}, {transform_indices = @transform_1, window_bounds = array<i64: 1, 4, 8, 8>}, {transform_indices = @transform_2, window_bounds = array<i64: 1, 4, 8, 8>}, {transform_indices = @transform_3, window_bounds = array<i64: 1, 4, 8, 8>}]} {
    %c0_i32 = arith.constant 0 : i32
    %0 = arith.cmpi eq, %arg2, %c0_i32 : i32
    %1 = arith.extui %0 : i1 to i32
    %c0_i32_0 = arith.constant 0 : i32
    %2 = arith.cmpi ne, %1, %c0_i32_0 : i32
    scf.if %2 {
      %cst_36 = arith.constant 0xFF800000 : f32
      %38 = vector.broadcast %cst_36 : f32 to vector<4x8x1xf32>
      %c0_37 = arith.constant 0 : index
      %c0_38 = arith.constant 0 : index
      %c0_39 = arith.constant 0 : index
      %39 = vector.load %arg7[%c0_37, %c0_38, %c0_39] : memref<4x8x1xf32, #tpu.memory_space<vmem>>, vector<4x8x1xf32>
      tpu.vector_store %arg7[%c0_37, %c0_38, %c0_39], %38 {strides = array<i32>} : memref<4x8x1xf32, #tpu.memory_space<vmem>>, vector<4x8x1xf32>,
      %cst_40 = arith.constant 0.000000e+00 : f32
      %40 = vector.broadcast %cst_40 : f32 to vector<4x8x1xf32>
      %c0_41 = arith.constant 0 : index
      %c0_42 = arith.constant 0 : index
      %c0_43 = arith.constant 0 : index
      %41 = vector.load %arg8[%c0_41, %c0_42, %c0_43] : memref<4x8x1xf32, #tpu.memory_space<vmem>>, vector<4x8x1xf32>
      tpu.vector_store %arg8[%c0_41, %c0_42, %c0_43], %40 {strides = array<i32>} : memref<4x8x1xf32, #tpu.memory_space<vmem>>, vector<4x8x1xf32>,
      %cst_44 = arith.constant 0.000000e+00 : f32
      %42 = vector.broadcast %cst_44 : f32 to vector<4x8x8xf32>
      %c0_45 = arith.constant 0 : index
      %c0_46 = arith.constant 0 : index
      %c0_47 = arith.constant 0 : index
      %43 = vector.load %arg9[%c0_45, %c0_46, %c0_47] : memref<4x8x8xf32, #tpu.memory_space<vmem>>, vector<4x8x8xf32>
      tpu.vector_store %arg9[%c0_45, %c0_46, %c0_47], %42 {strides = array<i32>} : memref<4x8x8xf32, #tpu.memory_space<vmem>>, vector<4x8x8xf32>,
    } else {
    }
    %c0 = arith.constant 0 : index
    %c0_1 = arith.constant 0 : index
    %c0_2 = arith.constant 0 : index
    %c0_3 = arith.constant 0 : index
    %3 = vector.load %arg3[%c0, %c0_1, %c0_2, %c0_3] : memref<1x4x8x8xbf16, #tpu.memory_space<vmem>>, vector<1x4x8x8xbf16>
    %4 = vector.shape_cast %3 : vector<1x4x8x8xbf16> to vector<4x8x8xbf16>
    %cst = arith.constant 3.535160e-01 : bf16
    %5 = vector.broadcast %cst : bf16 to vector<4x8x8xbf16>
    %6 = arith.mulf %4, %5 : vector<4x8x8xbf16>
    %c0_4 = arith.constant 0 : index
    %c0_5 = arith.constant 0 : index
    %c0_6 = arith.constant 0 : index
    %c0_7 = arith.constant 0 : index
    %7 = vector.load %arg4[%c0_4, %c0_5, %c0_6, %c0_7] : memref<1x4x8x8xbf16, #tpu.memory_space<vmem>>, vector<1x4x8x8xbf16>
    %8 = vector.shape_cast %7 : vector<1x4x8x8xbf16> to vector<4x8x8xbf16>
    %c0_8 = arith.constant 0 : index
    %c0_9 = arith.constant 0 : index
    %c0_10 = arith.constant 0 : index
    %c0_11 = arith.constant 0 : index
    %9 = vector.load %arg5[%c0_8, %c0_9, %c0_10, %c0_11] : memref<1x4x8x8xbf16, #tpu.memory_space<vmem>>, vector<1x4x8x8xbf16>
    %10 = vector.shape_cast %9 : vector<1x4x8x8xbf16> to vector<4x8x8xbf16>
    "tpu.trace_start"() <{level = 10 : i32, message = "hqd,hkd->hqk"}> : () -> ()
    %cst_12 = arith.constant dense<0.000000e+00> : vector<4x8x8xf32>
    %11 = tpu.matmul %6, %8, %cst_12 {dimension_numbers = #tpu.dot_dimension_numbers<[2], [2], [1], [1], [0, 0, 0, 1, 1, 1], [0], [0]>} : vector<4x8x8xbf16>, vector<4x8x8xbf16>, vector<4x8x8xf32> -> vector<4x8x8xf32>
    "tpu.trace_stop"() : () -> ()
    %c0_13 = arith.constant 0 : index
    %c0_14 = arith.constant 0 : index
    %c0_15 = arith.constant 0 : index
    %12 = vector.load %arg7[%c0_13, %c0_14, %c0_15] : memref<4x8x1xf32, #tpu.memory_space<vmem>>, vector<4x8x1xf32>
    %cst_16 = arith.constant dense<0xFF800000> : vector<4x8xf32>
    %13 = vector.multi_reduction <maximumf>, %11, %cst_16 [2] : vector<4x8x8xf32> to vector<4x8xf32>
    %14 = vector.shape_cast %13 : vector<4x8xf32> to vector<4x8x1xf32>
    %15 = arith.maximumf %12, %14 : vector<4x8x1xf32>
    %16 = arith.subf %12, %15 : vector<4x8x1xf32>
    %17 = math.exp %16 : vector<4x8x1xf32>
    %18 = vector.broadcast %15 : vector<4x8x1xf32> to vector<4x8x8xf32>
    %19 = arith.subf %11, %18 : vector<4x8x8xf32>
    %20 = math.exp %19 : vector<4x8x8xf32>
    %c0_17 = arith.constant 0 : index
    %c0_18 = arith.constant 0 : index
    %c0_19 = arith.constant 0 : index
    %21 = vector.load %arg8[%c0_17, %c0_18, %c0_19] : memref<4x8x1xf32, #tpu.memory_space<vmem>>, vector<4x8x1xf32>
    %22 = arith.mulf %17, %21 : vector<4x8x1xf32>
    %cst_20 = arith.constant dense<0.000000e+00> : vector<4x8xf32>
    %23 = vector.multi_reduction <add>, %20, %cst_20 [2] : vector<4x8x8xf32> to vector<4x8xf32>
    %24 = vector.shape_cast %23 : vector<4x8xf32> to vector<4x8x1xf32>
    %25 = arith.addf %22, %24 : vector<4x8x1xf32>
    %c0_21 = arith.constant 0 : index
    %c0_22 = arith.constant 0 : index
    %c0_23 = arith.constant 0 : index
    %26 = vector.load %arg8[%c0_21, %c0_22, %c0_23] : memref<4x8x1xf32, #tpu.memory_space<vmem>>, vector<4x8x1xf32>
    tpu.vector_store %arg8[%c0_21, %c0_22, %c0_23], %25 {strides = array<i32>} : memref<4x8x1xf32, #tpu.memory_space<vmem>>, vector<4x8x1xf32>,
    %c0_24 = arith.constant 0 : index
    %c0_25 = arith.constant 0 : index
    %c0_26 = arith.constant 0 : index
    %27 = vector.load %arg9[%c0_24, %c0_25, %c0_26] : memref<4x8x8xf32, #tpu.memory_space<vmem>>, vector<4x8x8xf32>
    %28 = vector.broadcast %17 : vector<4x8x1xf32> to vector<4x8x8xf32>
    %29 = arith.mulf %28, %27 : vector<4x8x8xf32>
    %30 = arith.truncf %20 : vector<4x8x8xf32> to vector<4x8x8xbf16>
    "tpu.trace_start"() <{level = 10 : i32, message = "hqk,hkd->hqd"}> : () -> ()
    %cst_27 = arith.constant dense<0.000000e+00> : vector<4x8x8xf32>
    %31 = tpu.matmul %30, %10, %cst_27 {dimension_numbers = #tpu.dot_dimension_numbers<[2], [1], [1], [2], [0, 0, 0, 1, 1, 2], [0], [0]>} : vector<4x8x8xbf16>, vector<4x8x8xbf16>, vector<4x8x8xf32> -> vector<4x8x8xf32>
    "tpu.trace_stop"() : () -> ()
    %32 = arith.addf %29, %31 : vector<4x8x8xf32>
    %c0_28 = arith.constant 0 : index
    %c0_29 = arith.constant 0 : index
    %c0_30 = arith.constant 0 : index
    %33 = vector.load %arg9[%c0_28, %c0_29, %c0_30] : memref<4x8x8xf32, #tpu.memory_space<vmem>>, vector<4x8x8xf32>
    tpu.vector_store %arg9[%c0_28, %c0_29, %c0_30], %32 {strides = array<i32>} : memref<4x8x8xf32, #tpu.memory_space<vmem>>, vector<4x8x8xf32>,
    %c0_31 = arith.constant 0 : index
    %c0_32 = arith.constant 0 : index
    %c0_33 = arith.constant 0 : index
    %34 = vector.load %arg7[%c0_31, %c0_32, %c0_33] : memref<4x8x1xf32, #tpu.memory_space<vmem>>, vector<4x8x1xf32>
    tpu.vector_store %arg7[%c0_31, %c0_32, %c0_33], %15 {strides = array<i32>} : memref<4x8x1xf32, #tpu.memory_space<vmem>>, vector<4x8x1xf32>,
    %c0_i32_34 = arith.constant 0 : i32
    %35 = arith.cmpi eq, %arg2, %c0_i32_34 : i32
    %36 = arith.extui %35 : i1 to i32
    %c0_i32_35 = arith.constant 0 : i32
    %37 = arith.cmpi ne, %36, %c0_i32_35 : i32
    scf.if %37 {
      %c0_36 = arith.constant 0 : index
      %c0_37 = arith.constant 0 : index
      %c0_38 = arith.constant 0 : index
      %38 = vector.load %arg9[%c0_36, %c0_37, %c0_38] : memref<4x8x8xf32, #tpu.memory_space<vmem>>, vector<4x8x8xf32>
      %c0_39 = arith.constant 0 : index
      %c0_40 = arith.constant 0 : index
      %c0_41 = arith.constant 0 : index
      %39 = vector.load %arg8[%c0_39, %c0_40, %c0_41] : memref<4x8x1xf32, #tpu.memory_space<vmem>>, vector<4x8x1xf32>
      %40 = tpu.reciprocal %39 {approx = true} : vector<4x8x1xf32> -> vector<4x8x1xf32>
      %41 = vector.broadcast %40 : vector<4x8x1xf32> to vector<4x8x8xf32>
      %42 = arith.mulf %38, %41 : vector<4x8x8xf32>
      %43 = arith.truncf %42 : vector<4x8x8xf32> to vector<4x8x8xbf16>
      %c0_42 = arith.constant 0 : index
      %c0_43 = arith.constant 0 : index
      %c0_44 = arith.constant 0 : index
      %c0_45 = arith.constant 0 : index
      %44 = vector.load %arg6[%c0_42, %c0_43, %c0_44, %c0_45] : memref<1x4x8x8xbf16, #tpu.memory_space<vmem>>, vector<1x4x8x8xbf16>
      %45 = vector.shape_cast %44 : vector<1x4x8x8xbf16> to vector<4x8x8xbf16>
      %46 = vector.shape_cast %43 : vector<4x8x8xbf16> to vector<1x4x8x8xbf16>
      tpu.vector_store %arg6[%c0_42, %c0_43, %c0_44, %c0_45], %46 {strides = array<i32>} : memref<1x4x8x8xbf16, #tpu.memory_space<vmem>>, vector<1x4x8x8xbf16>,
    } else {
    }
    return
  }
  func.func @transform_0(%arg0: i32, %arg1: i32, %arg2: i32) -> (i32, i32, i32, i32) {
    %c0_i32 = arith.constant 0 : i32
    %c0_i32_0 = arith.constant 0 : i32
    %c0_i32_1 = arith.constant 0 : i32
    return %arg0, %c0_i32, %arg1, %c0_i32_0 : i32, i32, i32, i32
  }
  func.func @transform_1(%arg0: i32, %arg1: i32, %arg2: i32) -> (i32, i32, i32, i32) {
    %c0_i32 = arith.constant 0 : i32
    %c0_i32_0 = arith.constant 0 : i32
    %c0_i32_1 = arith.constant 0 : i32
    return %arg0, %c0_i32, %arg2, %c0_i32_0 : i32, i32, i32, i32
  }
  func.func @transform_2(%arg0: i32, %arg1: i32, %arg2: i32) -> (i32, i32, i32, i32) {
    %c0_i32 = arith.constant 0 : i32
    %c0_i32_0 = arith.constant 0 : i32
    %c0_i32_1 = arith.constant 0 : i32
    return %arg0, %c0_i32, %arg2, %c0_i32_0 : i32, i32, i32, i32
  }
  func.func @transform_3(%arg0: i32, %arg1: i32, %arg2: i32) -> (i32, i32, i32, i32) {
    %c0_i32 = arith.constant 0 : i32
    %c0_i32_0 = arith.constant 0 : i32
    %c0_i32_1 = arith.constant 0 : i32
    return %arg0, %c0_i32, %arg1, %c0_i32_0 : i32, i32, i32, i32
  }
}

module attributes {stable_mosaic.version = 11 : i64} {
  func.func @_linear_kernel(%arg0: i32, %arg1: i32, %arg2: i32, %arg3: memref<16x32xbf16, #tpu.memory_space<vmem>>, %arg4: memref<32x32xbf16, #tpu.memory_space<vmem>>, %arg5: memref<1x32xf32, #tpu.memory_space<vmem>>, %arg6: memref<16x32xf32, #tpu.memory_space<vmem>>, %arg7: memref<16x32xf32, #tpu.memory_space<vmem>>) attributes {dimension_semantics = [#tpu.dimension_semantics<parallel>, #tpu.dimension_semantics<parallel>, #tpu.dimension_semantics<arbitrary>], iteration_bounds = array<i64: 1, 1, 1>, scalar_prefetch = 0 : i64, scratch_operands = 1 : i64, tpu.core_type = #tpu.core_type<tc>, window_params = [{transform_indices = @transform_0, window_bounds = array<i64: 16, 32>}, {transform_indices = @transform_1, window_bounds = array<i64: 32, 32>}, {transform_indices = @transform_2, window_bounds = array<i64: 1, 32>}, {transform_indices = @transform_3, window_bounds = array<i64: 16, 32>}]} {
    %c0_i32 = arith.constant 0 : i32
    %0 = arith.cmpi eq, %arg2, %c0_i32 : i32
    %1 = arith.extui %0 : i1 to i32
    %c0_i32_0 = arith.constant 0 : i32
    %2 = arith.cmpi ne, %1, %c0_i32_0 : i32
    scf.if %2 {
      %cst_10 = arith.constant 0.000000e+00 : f32
      %12 = vector.broadcast %cst_10 : f32 to vector<16x32xf32>
      %c0_11 = arith.constant 0 : index
      %c0_12 = arith.constant 0 : index
      %13 = vector.load %arg7[%c0_11, %c0_12] : memref<16x32xf32, #tpu.memory_space<vmem>>, vector<16x32xf32>
      tpu.vector_store %arg7[%c0_11, %c0_12], %12 {strides = array<i32>} : memref<16x32xf32, #tpu.memory_space<vmem>>, vector<16x32xf32>,
    } else {
    }
    %c0 = arith.constant 0 : index
    %c0_1 = arith.constant 0 : index
    %3 = vector.load %arg7[%c0, %c0_1] : memref<16x32xf32, #tpu.memory_space<vmem>>, vector<16x32xf32>
    %c0_2 = arith.constant 0 : index
    %c0_3 = arith.constant 0 : index
    %4 = vector.load %arg3[%c0_2, %c0_3] : memref<16x32xbf16, #tpu.memory_space<vmem>>, vector<16x32xbf16>
    %c0_4 = arith.constant 0 : index
    %c0_5 = arith.constant 0 : index
    %5 = vector.load %arg4[%c0_4, %c0_5] : memref<32x32xbf16, #tpu.memory_space<vmem>>, vector<32x32xbf16>
    %cst = arith.constant dense<0.000000e+00> : vector<16x32xf32>
    %6 = tpu.matmul %4, %5, %cst {dimension_numbers = #tpu.dot_dimension_numbers<[1], [0], [0], [1], [0, 0, 1, 1], [], []>} : vector<16x32xbf16>, vector<32x32xbf16>, vector<16x32xf32> -> vector<16x32xf32>
    %7 = arith.addf %3, %6 : vector<16x32xf32>
    %c0_6 = arith.constant 0 : index
    %c0_7 = arith.constant 0 : index
    %8 = vector.load %arg7[%c0_6, %c0_7] : memref<16x32xf32, #tpu.memory_space<vmem>>, vector<16x32xf32>
    tpu.vector_store %arg7[%c0_6, %c0_7], %7 {strides = array<i32>} : memref<16x32xf32, #tpu.memory_space<vmem>>, vector<16x32xf32>,
    %c0_i32_8 = arith.constant 0 : i32
    %9 = arith.cmpi eq, %arg2, %c0_i32_8 : i32
    %10 = arith.extui %9 : i1 to i32
    %c0_i32_9 = arith.constant 0 : i32
    %11 = arith.cmpi ne, %10, %c0_i32_9 : i32
    scf.if %11 {
      %c0_10 = arith.constant 0 : index
      %c0_11 = arith.constant 0 : index
      %12 = vector.load %arg7[%c0_10, %c0_11] : memref<16x32xf32, #tpu.memory_space<vmem>>, vector<16x32xf32>
      %c0_12 = arith.constant 0 : index
      %c0_13 = arith.constant 0 : index
      %13 = vector.load %arg5[%c0_12, %c0_13] : memref<1x32xf32, #tpu.memory_space<vmem>>, vector<1x32xf32>
      %14 = vector.broadcast %13 : vector<1x32xf32> to vector<16x32xf32>
      %15 = arith.addf %12, %14 : vector<16x32xf32>
      %c0_14 = arith.constant 0 : index
      %c0_15 = arith.constant 0 : index
      %16 = vector.load %arg6[%c0_14, %c0_15] : memref<16x32xf32, #tpu.memory_space<vmem>>, vector<16x32xf32>
      tpu.vector_store %arg6[%c0_14, %c0_15], %15 {strides = array<i32>} : memref<16x32xf32, #tpu.memory_space<vmem>>, vector<16x32xf32>,
    } else {
    }
    return
  }
  func.func @transform_0(%arg0: i32, %arg1: i32, %arg2: i32) -> (i32, i32) {
    %c0_i32 = arith.constant 0 : i32
    return %arg0, %arg2 : i32, i32
  }
  func.func @transform_1(%arg0: i32, %arg1: i32, %arg2: i32) -> (i32, i32) {
    %c0_i32 = arith.constant 0 : i32
    return %arg2, %arg1 : i32, i32
  }
  func.func @transform_2(%arg0: i32, %arg1: i32, %arg2: i32) -> (i32, i32) {
    %c0_i32 = arith.constant 0 : i32
    %c0_i32_0 = arith.constant 0 : i32
    return %c0_i32, %arg1 : i32, i32
  }
  func.func @transform_3(%arg0: i32, %arg1: i32, %arg2: i32) -> (i32, i32) {
    %c0_i32 = arith.constant 0 : i32
    return %arg0, %arg1 : i32, i32
  }
}

</mosaic_0001>

<llo_original>
// kernel: multi_head_attention.3
$region0: #{multi_head_attention.3}
  #allocation0 [shape = 'u32[]', space=smem, size = 0x4, offset = 0x4, fixed_abs, tag = 'smem constant byte address 0x4 - core index']
  #allocation1 [shape = 'u32[144,128]{1,0:T(1,128)}', space=vmem, size = 0x12000, scoped, tag = 'internal scratch']
  #allocation2 [shape = 'f32[16,96]{1,0:T(8,128)}', space=vmem, size = 0x2000, scoped, tag = 'scratch operand']
  %s0 = inlined_call_operand.vmem [shape: bf16[16,32], index: 0, kind: input, shape index: {}]
  %s1 = inlined_call_operand.vmem [shape: bf16[32,96], index: 1, kind: input, shape index: {}]
  %s2 = inlined_call_operand.vmem [shape: f32[1,96], index: 2, kind: input, shape index: {}]
  %s3 = inlined_call_operand.vmem [shape: bf16[16,96], index: 3, kind: output, shape index: {}]
  %s4 = sld [smem:[#allocation0]]
  $region30: #{multi_head_attention.3} parent=0
    _
  %s6 = ssub.s32 1, %s4
  %s7 = scalar_select 0, %s6, %s4
  // Predicated region
  $region2: #{multi_head_attention.3} parent=0 // pred_check
    _
  $region3: #{multi_head_attention.3} parent=0 // pred_check_branch
    %9 = sbr.rel (0) target = $region5
  $region4: #{multi_head_attention.3} parent=0 // pred_region
    _
  $region5: #{multi_head_attention.3} parent=0 // pred_fallthru
    _
  // Predicated region
  $region6: #{multi_head_attention.3} parent=0 // pred_check
    _
  $region7: #{multi_head_attention.3} parent=0 // pred_check_branch
    %11 = sbr.rel (0) target = $region9
  $region8: #{multi_head_attention.3} parent=0 // pred_region
    _
  $region9: #{multi_head_attention.3} parent=0 // pred_fallthru
    _
  // Predicated region
  $region10: #{multi_head_attention.3} parent=0 // pred_check
    _
  $region11: #{multi_head_attention.3} parent=0 // pred_check_branch
    %13 = sbr.rel (0) target = $region13
  $region12: #{multi_head_attention.3} parent=0 // pred_region
    _
  $region13: #{multi_head_attention.3} parent=0 // pred_fallthru
    _
  %p15 = scmp.eq.s32.totalorder 0, 0
  // Predicated region
  $region14: #{multi_head_attention.3} parent=0 // pred_check
    %p16 = pneg %p15
  $region15: #{multi_head_attention.3} parent=0 // pred_check_branch
    %18 = sbr.rel (%p16) target = $region17
  $region16: #{multi_head_attention.3} parent=0 // pred_region
    %vm19 = vcmask 785408
    %20 = vst.msk [vmem:[#allocation2] sm:$0xff] %vm19, 0.0
    %21 = vst.msk [vmem:[#allocation2 + $0x8] sm:$0xff] %vm19, 0.0
  $region17: #{multi_head_attention.3} parent=0 // pred_fallthru
    _
  %v22 = vld [vmem:[#allocation2] sm:$0xff]
  %v23 = vld [vmem:[#allocation2 + $0x8] sm:$0xff]
  %v24 = vld [vmem:[%s0] sm:$0xf]
  %v25 = vld [vmem:[%s0 + $0x4] sm:$0xf]
  %v26 = vld [vmem:[%s1] sm:$0xf]
  %v27 = vld [vmem:[%s1 + $0x4] sm:$0xf]
  %v28 = vld [vmem:[%s1 + $0x8] sm:$0xf]
  %v29 = vld [vmem:[%s1 + $0xc] sm:$0xf]
  %v32 = vunpack.c.l.b16 %v24
  %v33 = vunpack.c.l.b16 %v25
  %v34 = vpack.c.b16 %v33, %v32
  %v39 = vunpack.c.l.b16 %v26
  %v40 = vunpack.c.l.b16 %v27
  %v41 = vunpack.c.l.b16 %v28
  %v42 = vunpack.c.l.b16 %v29
  %v43 = vpack.c.b16 %v40, %v39
  %v44 = vpack.c.b16 %v42, %v41
  %vm47 = vcmask 261120
  %v49 = vsel %vm47, %v34, 0
  %51 = vmatprep.subr.bf16.mxu0 0
  %52 = vmatpush1.bf16.msra.mxu0 0
  %53 = vmatprep.subr.bf16.mxu0 0
  %54 = vmatpush1.bf16.msra.mxu0 0
  %55 = vmatprep.subr.bf16.mxu0 0
  %56 = vmatpush1.bf16.msra.mxu0 0
  %57 = vmatprep.subr.bf16.mxu0 0
  %58 = vmatpush1.bf16.msra.mxu0 0
  %59 = vmatprep.subr.bf16.mxu0 0
  %60 = vmatpush1.bf16.msra.mxu0 0
  %61 = vmatprep.subr.bf16.mxu0 0
  %62 = vmatpush1.bf16.msra.mxu0 0
  %63 = vmatprep.subr.bf16.mxu0 0
  %64 = vmatpush1.bf16.msra.mxu0 %v44
  %65 = vmatprep.subr.bf16.mxu0 0
  %66 = vmatpush1.bf16.msra.mxu0 %v43
  %67 = vmatprep.subr.bf16.mxu0 0
  %68 = vmatpush2.bf16.msra.mxu0 0
  %69 = vmatprep.subr.bf16.mxu0 0
  %70 = vmatpush2.bf16.msra.mxu0 0
  %71 = vmatprep.subr.bf16.mxu0 0
  %72 = vmatpush2.bf16.msra.mxu0 0
  %73 = vmatprep.subr.bf16.mxu0 0
  %74 = vmatpush2.bf16.msra.mxu0 0
  %75 = vmatprep.subr.bf16.mxu0 0
  %76 = vmatpush2.bf16.msra.mxu0 0
  %77 = vmatprep.subr.bf16.mxu0 0
  %78 = vmatpush2.bf16.msra.mxu0 0
  %79 = vmatprep.subr.bf16.mxu0 0
  %80 = vmatpush2.bf16.msra.mxu0 0
  %81 = vmatprep.subr.bf16.mxu0 0
  %82 = vmatpush2.bf16.msra.mxu0 0
  %83 = vmatprep.mubr.bf16.mxu0 0
  %84 = vmatmul.mubr.bf16.gmra.mxu0 %v49
  %v85 = vpop.f32.mrf.mxu0
  %v86 = vadd.f32 0.0, %v85
  %v87 = vpop.f32.mrf.mxu0
  %v88 = vpop.f32.mrf.mxu0
  %v89 = vadd.f32 0.0, %v88
  %v90 = vpop.f32.mrf.mxu0
  %91 = vdwg.mxu0
  %v92 = vadd.f32 %v22, %v86
  %v93 = vadd.f32 %v23, %v89
  %vm94 = vcmask 785408
  %95 = vst.msk [vmem:[#allocation2] sm:$0xff] %vm94, %v92
  %96 = vst.msk [vmem:[#allocation2 + $0x8] sm:$0xff] %vm94, %v93
  // Predicated region
  $region18: #{multi_head_attention.3} parent=0 // pred_check
    %p97 = pneg %p15
  $region19: #{multi_head_attention.3} parent=0 // pred_check_branch
    %99 = sbr.rel (%p97) target = $region21
  $region20: #{multi_head_attention.3} parent=0 // pred_region
    %v100 = vld [vmem:[#allocation2] sm:$0xff]
    %v101 = vld [vmem:[#allocation2 + $0x8] sm:$0xff]
    %v102 = vld [vmem:[%s2] sm:$0x1]
    %v104 = vlaneseq
    %v105 = vshrl.u32 %v104, 7
    %v106 = vsub.s32 0, %v105
    %v107 = vrot.slane %v102, %v106
    %v109 = vadd.f32 %v100, %v107
    %v110 = vadd.f32 %v101, %v107
    %v111 = vpack.c.bf16 %v110, %v109
    %v113 = vunpack.c.l.b16 %v111
    %v114 = vunpack.c.h.b16 %v111
    %v115 = vpack.c.b16 %v113, %v113
    %v116 = vpack.c.b16 %v114, %v114
    %vm119 = vcmask 781312
    %120 = vst.msk [vmem:[%s3] sm:$0xf] %vm119, %v115
    %121 = vst.msk [vmem:[%s3 + $0x4] sm:$0xf] %vm119, %v116
  $region21: #{multi_head_attention.3} parent=0 // pred_fallthru
    _
  // Predicated region
  $region22: #{multi_head_attention.3} parent=0 // pred_check
    _
  $region23: #{multi_head_attention.3} parent=0 // pred_check_branch
    %123 = sbr.rel (0) target = $region25
  $region24: #{multi_head_attention.3} parent=0 // pred_region
    _
  $region25: #{multi_head_attention.3} parent=0 // pred_fallthru
    _
  // Predicated region
  $region26: #{multi_head_attention.3} parent=0 // pred_check
    _
  $region27: #{multi_head_attention.3} parent=0 // pred_check_branch
    %125 = sbr.rel (0) target = $region29
  $region28: #{multi_head_attention.3} parent=0 // pred_region
    _
  $region29: #{multi_head_attention.3} parent=0 // pred_fallthru
    _

// kernel: multi_head_attention.5
$region0: #{multi_head_attention.5}
  #allocation0 [shape = 'u32[]', space=smem, size = 0x4, offset = 0x4, fixed_abs, tag = 'smem constant byte address 0x4 - core index']
  #allocation1 [shape = 'u32[144,128]{1,0:T(1,128)}', space=vmem, size = 0x12000, scoped, tag = 'internal scratch']
  #allocation2 [shape = 'f32[16,32]{1,0:T(8,128)}', space=vmem, size = 0x2000, scoped, tag = 'scratch operand']
  %s0 = inlined_call_operand.vmem [shape: bf16[16,32], index: 0, kind: input, shape index: {}]
  %s1 = inlined_call_operand.vmem [shape: bf16[32,32], index: 1, kind: input, shape index: {}]
  %s2 = inlined_call_operand.vmem [shape: f32[1,32], index: 2, kind: input, shape index: {}]
  %s3 = inlined_call_operand.hbm [shape: f32[16,32], index: 3, kind: output, shape index: {}]
  %s4 = sld [smem:[#allocation0]]
  $region30: #{multi_head_attention.5} parent=0
    _
  %s6 = ssub.s32 1, %s4
  %s7 = scalar_select 0, %s6, %s4
  $region1: #{multi_head_attention.5} parent=0
    #allocation3 [shape = 'u8[8192]{0}', space=vmem, size = 0x2000, scoped, tag = 'output window, operand 0, single buffered']
    #allocation4 [shape = 's32[1]{0}', space=sflag, size = 0x4, scoped, tag = 'scoped memory for multi_head_attention.5']
    %8 = vsyncpa [#allocation4], 0
    // Predicated region
    $region2: #{multi_head_attention.5} parent=1 // pred_check
      _
    $region3: #{multi_head_attention.5} parent=1 // pred_check_branch
      %10 = sbr.rel (0) target = $region5
    $region4: #{multi_head_attention.5} parent=1 // pred_region
      _
    $region5: #{multi_head_attention.5} parent=1 // pred_fallthru
      _
    // Predicated region
    $region6: #{multi_head_attention.5} parent=1 // pred_check
      _
    $region7: #{multi_head_attention.5} parent=1 // pred_check_branch
      %12 = sbr.rel (0) target = $region9
    $region8: #{multi_head_attention.5} parent=1 // pred_region
      _
    $region9: #{multi_head_attention.5} parent=1 // pred_fallthru
      _
    // Predicated region
    $region10: #{multi_head_attention.5} parent=1 // pred_check
      _
    $region11: #{multi_head_attention.5} parent=1 // pred_check_branch
      %14 = sbr.rel (0) target = $region13
    $region12: #{multi_head_attention.5} parent=1 // pred_region
      _
    $region13: #{multi_head_attention.5} parent=1 // pred_fallthru
      _
    %p16 = scmp.eq.s32.totalorder 0, 0
    // Predicated region
    $region14: #{multi_head_attention.5} parent=1 // pred_check
      %p17 = pneg %p16
    $region15: #{multi_head_attention.5} parent=1 // pred_check_branch
      %19 = sbr.rel (%p17) target = $region17
    $region16: #{multi_head_attention.5} parent=1 // pred_region
      %vm20 = vcmask 261120
      %21 = vst.msk [vmem:[#allocation2] sm:$0xff] %vm20, 0.0
      %22 = vst.msk [vmem:[#allocation2 + $0x8] sm:$0xff] %vm20, 0.0
    $region17: #{multi_head_attention.5} parent=1 // pred_fallthru
      _
    %v23 = vld [vmem:[#allocation2] sm:$0xff]
    %v24 = vld [vmem:[#allocation2 + $0x8] sm:$0xff]
    %v25 = vld [vmem:[%s0] sm:$0xf]
    %v26 = vld [vmem:[%s0 + $0x4] sm:$0xf]
    %v27 = vld [vmem:[%s1] sm:$0xf]
    %v28 = vld [vmem:[%s1 + $0x4] sm:$0xf]
    %v29 = vld [vmem:[%s1 + $0x8] sm:$0xf]
    %v30 = vld [vmem:[%s1 + $0xc] sm:$0xf]
    %v33 = vunpack.c.l.b16 %v25
    %v34 = vunpack.c.l.b16 %v26
    %v35 = vpack.c.b16 %v34, %v33
    %v40 = vunpack.c.l.b16 %v27
    %v41 = vunpack.c.l.b16 %v28
    %v42 = vunpack.c.l.b16 %v29
    %v43 = vunpack.c.l.b16 %v30
    %v44 = vpack.c.b16 %v41, %v40
    %v45 = vpack.c.b16 %v43, %v42
    %vm48 = vcmask 261120
    %v50 = vsel %vm48, %v35, 0
    %52 = vmatprep.subr.bf16.mxu0 0
    %53 = vmatpush1.bf16.msra.mxu0 0
    %54 = vmatprep.subr.bf16.mxu0 0
    %55 = vmatpush1.bf16.msra.mxu0 0
    %56 = vmatprep.subr.bf16.mxu0 0
    %57 = vmatpush1.bf16.msra.mxu0 0
    %58 = vmatprep.subr.bf16.mxu0 0
    %59 = vmatpush1.bf16.msra.mxu0 0
    %60 = vmatprep.subr.bf16.mxu0 0
    %61 = vmatpush1.bf16.msra.mxu0 0
    %62 = vmatprep.subr.bf16.mxu0 0
    %63 = vmatpush1.bf16.msra.mxu0 0
    %64 = vmatprep.subr.bf16.mxu0 0
    %65 = vmatpush1.bf16.msra.mxu0 %v45
    %66 = vmatprep.subr.bf16.mxu0 0
    %67 = vmatpush1.bf16.msra.mxu0 %v44
    %68 = vmatprep.subr.bf16.mxu0 0
    %69 = vmatpush2.bf16.msra.mxu0 0
    %70 = vmatprep.subr.bf16.mxu0 0
    %71 = vmatpush2.bf16.msra.mxu0 0
    %72 = vmatprep.subr.bf16.mxu0 0
    %73 = vmatpush2.bf16.msra.mxu0 0
    %74 = vmatprep.subr.bf16.mxu0 0
    %75 = vmatpush2.bf16.msra.mxu0 0
    %76 = vmatprep.subr.bf16.mxu0 0
    %77 = vmatpush2.bf16.msra.mxu0 0
    %78 = vmatprep.subr.bf16.mxu0 0
    %79 = vmatpush2.bf16.msra.mxu0 0
    %80 = vmatprep.subr.bf16.mxu0 0
    %81 = vmatpush2.bf16.msra.mxu0 0
    %82 = vmatprep.subr.bf16.mxu0 0
    %83 = vmatpush2.bf16.msra.mxu0 0
    %84 = vmatprep.mubr.bf16.mxu0 0
    %85 = vmatmul.mubr.bf16.gmra.mxu0 %v50
    %v86 = vpop.f32.mrf.mxu0
    %v87 = vadd.f32 0.0, %v86
    %v88 = vpop.f32.mrf.mxu0
    %v89 = vpop.f32.mrf.mxu0
    %v90 = vadd.f32 0.0, %v89
    %v91 = vpop.f32.mrf.mxu0
    %92 = vdwg.mxu0
    %v93 = vadd.f32 %v23, %v87
    %v94 = vadd.f32 %v24, %v90
    %95 = vst.msk [vmem:[#allocation2] sm:$0xff] %vm48, %v93
    %96 = vst.msk [vmem:[#allocation2 + $0x8] sm:$0xff] %vm48, %v94
    // Predicated region
    $region18: #{multi_head_attention.5} parent=1 // pred_check
      %p97 = pneg %p16
    $region19: #{multi_head_attention.5} parent=1 // pred_check_branch
      %99 = sbr.rel (%p97) target = $region21
    $region20: #{multi_head_attention.5} parent=1 // pred_region
      %v100 = vld [vmem:[#allocation2] sm:$0xff]
      %v101 = vld [vmem:[#allocation2 + $0x8] sm:$0xff]
      %v102 = vld [vmem:[%s2] sm:$0x1]
      %v104 = vlaneseq
      %v105 = vshrl.u32 %v104, 7
      %v106 = vsub.s32 0, %v105
      %v107 = vrot.slane %v102, %v106
      %v109 = vadd.f32 %v100, %v107
      %v110 = vadd.f32 %v101, %v107
      %111 = vst.msk [vmem:[#allocation3] sm:$0xff] %vm48, %v109
      %112 = vst.msk [vmem:[#allocation3 + $0x8] sm:$0xff] %vm48, %v110
    $region21: #{multi_head_attention.5} parent=1 // pred_fallthru
      _
    // Predicated region
    $region22: #{multi_head_attention.5} parent=1 // pred_check
      _
    $region23: #{multi_head_attention.5} parent=1 // pred_check_branch
      %114 = sbr.rel (0) target = $region25
    $region24: #{multi_head_attention.5} parent=1 // pred_region
      %s116 = ssub.s32 256, 256
      %117 = vsyncadd [#allocation4], %s116
      %s118 = sshll.u32 [#allocation3], 4
      %s119 = int_to_ptr.vmem [resolvable:$true] %s118
      %124 = dma.vmem_to_hbm [thread:$0]  %s119, 256, %s3, [#allocation4], 128, 128, 8
    $region25: #{multi_head_attention.5} parent=1 // pred_fallthru
      _
    // Predicated region
    $region26: #{multi_head_attention.5} parent=1 // pred_check
      _
    $region27: #{multi_head_attention.5} parent=1 // pred_check_branch
      %126 = sbr.rel (0) target = $region29
    $region28: #{multi_head_attention.5} parent=1 // pred_region
      %127 = dma.done [#allocation4], 256
    $region29: #{multi_head_attention.5} parent=1 // pred_fallthru
      _
    %128 = vsyncpa [#allocation4], 1

// kernel: multi_head_attention.4
$region0: #{multi_head_attention.4}
  #allocation0 [shape = 'u32[]', space=smem, size = 0x4, offset = 0x4, fixed_abs, tag = 'smem constant byte address 0x4 - core index']
  #allocation1 [shape = 'u32[144,128]{1,0:T(1,128)}', space=vmem, size = 0x12000, scoped, tag = 'internal scratch']
  #allocation2 [shape = 'f32[4,8,1]{2,1,0:T(8,128)}', space=vmem, size = 0x4000, scoped, tag = 'scratch operand']
  #allocation3 [shape = 'f32[4,8,1]{2,1,0:T(8,128)}', space=vmem, size = 0x4000, scoped, tag = 'scratch operand']
  #allocation4 [shape = 'f32[4,8,8]{2,1,0:T(8,128)}', space=vmem, size = 0x4000, scoped, tag = 'scratch operand']
  %s0 = inlined_call_operand.vmem [shape: bf16[2,4,8,8], index: 0, kind: input, shape index: {}]
  %s1 = inlined_call_operand.vmem [shape: bf16[2,4,8,8], index: 1, kind: input, shape index: {}]
  %s2 = inlined_call_operand.vmem [shape: bf16[2,4,8,8], index: 2, kind: input, shape index: {}]
  %s3 = inlined_call_operand.vmem [shape: bf16[2,4,8,8], index: 3, kind: output, shape index: {}]
  %s4 = sld [smem:[#allocation0]]
  $region53: #{multi_head_attention.4} parent=0
    _
  %s6 = ssub.s32 1, %s4
  %s7 = scalar_select 0, %s6, %s4
  loop: start=0, step=1, limit=4
  $region2: #{multi_head_attention.4} parent=0 // loop_pre_header
    _
  $region3: #{multi_head_attention.4} parent=0 // loop_header
    %s9 = sphi 0, %s13
    %p10 = scmp.ge.s32.totalorder %s9, 4
    %s16 = sphi 0, %s35
    %s17 = sphi 0, %s31
    %s18 = sphi 0, %s27
    %s19 = sphi 0, %s16
    %s20 = sphi 0, %s17
    %s21 = sphi 0, %s18
    %s22 = sphi 0, %s19
    %s23 = sphi 0, %s20
    %s24 = sphi 0, %s21
    %s40 = sphi 0, %s42
    %s43 = sphi 0, %s40
    %s44 = sphi 0, %s43
    %s60 = sphi 0, %s44
    %s68 = sphi 0, %s70
    %s71 = sphi 0, %s68
    %s72 = sphi 0, %s71
    %s88 = sphi 0, %s72
    %s96 = sphi 0, %s98
    %s99 = sphi 0, %s96
    %s100 = sphi 0, %s99
    %s116 = sphi 0, %s100
    %s124 = sphi 0, %s126
    %s127 = sphi 0, %s124
    %s128 = sphi 0, %s127
    %s144 = sphi 0, %s128
  $region4: #{multi_head_attention.4} parent=0 // loop_header_branch
    %12 = sbr.rel (%p10) target = $region8
  $region5: #{multi_head_attention.4} parent=0 // loop_body
    %s14 = ssub.s32 %s9, 1
    %s15 = ssub.s32 %s9, 2
    %s25 = sadd.s32 1, %s18
    %p26 = scmp.ge.s32.totalorder %s25, 1
    %s27 = scalar_select %p26, 0, %s25
    %s28 = sadd.s32 1, %s17
    %s29 = scalar_select %p26, %s28, %s17
    %p30 = scmp.ge.s32.totalorder %s29, 1
    %s31 = scalar_select %p30, 0, %s29
    %s32 = sadd.s32 1, %s16
    %s33 = scalar_select %p30, %s32, %s16
    %p34 = scmp.ge.s32.totalorder %s33, 2
    %s35 = scalar_select %p34, 0, %s33
    %s36 = ssub.s32 %s16, %s35
    %s37 = ssub.s32 %s17, %s31
    %s38 = sor.u32 %s36, %s37
    %p39 = scmp.eq.s32.totalorder %s38, 0
    %s41 = sadd.s32 %s40, 1
    %s42 = scalar_select %p39, %s40, %s41
    %p45 = pneg %p39
    %p46 = scmp.eq.s32.totalorder %s9, 1
    %p47 = por %p45, %p46
    %p48 = scmp.ne.s32.totalorder %s40, %s43
    %p49 = scmp.eq.s32.totalorder %s9, 0
    %p50 = por %p48, %p49
    %p51 = scmp.ne.s32.totalorder %s40, %s43
    %p52 = scmp.eq.s32.totalorder %s14, 1
    %p53 = por %p51, %p52
    %p54 = scmp.ne.s32.totalorder %s43, %s44
    %p55 = scmp.eq.s32.totalorder %s14, 0
    %p56 = por %p54, %p55
    %p57 = scmp.ne.s32.totalorder %s43, %s44
    %p58 = scmp.eq.s32.totalorder %s15, 1
    %p59 = por %p57, %p58
    %p61 = scmp.ne.s32.totalorder %s44, %s60
    %p62 = scmp.eq.s32.totalorder %s15, 0
    %p63 = por %p61, %p62
    %s64 = ssub.s32 %s16, %s35
    %s65 = ssub.s32 %s18, %s27
    %s66 = sor.u32 %s64, %s65
    %p67 = scmp.eq.s32.totalorder %s66, 0
    %s69 = sadd.s32 %s68, 1
    %s70 = scalar_select %p67, %s68, %s69
    %p73 = pneg %p67
    %p74 = scmp.eq.s32.totalorder %s9, 1
    %p75 = por %p73, %p74
    %p76 = scmp.ne.s32.totalorder %s68, %s71
    %p77 = scmp.eq.s32.totalorder %s9, 0
    %p78 = por %p76, %p77
    %p79 = scmp.ne.s32.totalorder %s68, %s71
    %p80 = scmp.eq.s32.totalorder %s14, 1
    %p81 = por %p79, %p80
    %p82 = scmp.ne.s32.totalorder %s71, %s72
    %p83 = scmp.eq.s32.totalorder %s14, 0
    %p84 = por %p82, %p83
    %p85 = scmp.ne.s32.totalorder %s71, %s72
    %p86 = scmp.eq.s32.totalorder %s15, 1
    %p87 = por %p85, %p86
    %p89 = scmp.ne.s32.totalorder %s72, %s88
    %p90 = scmp.eq.s32.totalorder %s15, 0
    %p91 = por %p89, %p90
    %s92 = ssub.s32 %s16, %s35
    %s93 = ssub.s32 %s18, %s27
    %s94 = sor.u32 %s92, %s93
    %p95 = scmp.eq.s32.totalorder %s94, 0
    %s97 = sadd.s32 %s96, 1
    %s98 = scalar_select %p95, %s96, %s97
    %p101 = pneg %p95
    %p102 = scmp.eq.s32.totalorder %s9, 1
    %p103 = por %p101, %p102
    %p104 = scmp.ne.s32.totalorder %s96, %s99
    %p105 = scmp.eq.s32.totalorder %s9, 0
    %p106 = por %p104, %p105
    %p107 = scmp.ne.s32.totalorder %s96, %s99
    %p108 = scmp.eq.s32.totalorder %s14, 1
    %p109 = por %p107, %p108
    %p110 = scmp.ne.s32.totalorder %s99, %s100
    %p111 = scmp.eq.s32.totalorder %s14, 0
    %p112 = por %p110, %p111
    %p113 = scmp.ne.s32.totalorder %s99, %s100
    %p114 = scmp.eq.s32.totalorder %s15, 1
    %p115 = por %p113, %p114
    %p117 = scmp.ne.s32.totalorder %s100, %s116
    %p118 = scmp.eq.s32.totalorder %s15, 0
    %p119 = por %p117, %p118
    %s120 = ssub.s32 %s16, %s35
    %s121 = ssub.s32 %s17, %s31
    %s122 = sor.u32 %s120, %s121
    %p123 = scmp.eq.s32.totalorder %s122, 0
    %s125 = sadd.s32 %s124, 1
    %s126 = scalar_select %p123, %s124, %s125
    %p129 = pneg %p123
    %p130 = scmp.eq.s32.totalorder %s9, 1
    %p131 = por %p129, %p130
    %p132 = scmp.ne.s32.totalorder %s124, %s127
    %p133 = scmp.eq.s32.totalorder %s9, 0
    %p134 = por %p132, %p133
    %p135 = scmp.ne.s32.totalorder %s124, %s127
    %p136 = scmp.eq.s32.totalorder %s14, 1
    %p137 = por %p135, %p136
    %p138 = scmp.ne.s32.totalorder %s127, %s128
    %p139 = scmp.eq.s32.totalorder %s14, 0
    %p140 = por %p138, %p139
    %p141 = scmp.ne.s32.totalorder %s127, %s128
    %p142 = scmp.eq.s32.totalorder %s15, 1
    %p143 = por %p141, %p142
    %p145 = scmp.ne.s32.totalorder %s128, %s144
    %p146 = scmp.eq.s32.totalorder %s15, 0
    %p147 = por %p145, %p146
    %p148 = scmp.le.s32.totalorder 1, %s9
    %p149 = scmp.lt.s32.totalorder %s9, 3
    %p150 = pnand %p148, %p149
    %p151 = pneg %p150
    // Predicated region
    $region9: #{multi_head_attention.4} parent=5 // pred_check
      _
    $region10: #{multi_head_attention.4} parent=5 // pred_check_branch
      %153 = sbr.rel (%p150) target = $region12
    $region11: #{multi_head_attention.4} parent=5 // pred_region
      %s154 = ssub.s32 %s9, 1
    $region12: #{multi_head_attention.4} parent=5 // pred_fallthru
      _
    %p155 = scmp.lt.s32.totalorder %s9, 2
    // Predicated region
    $region13: #{multi_head_attention.4} parent=5 // pred_check
      %p156 = pneg %p155
    $region14: #{multi_head_attention.4} parent=5 // pred_check_branch
      %158 = sbr.rel (%p156) target = $region16
    $region15: #{multi_head_attention.4} parent=5 // pred_region
      // Predicated region
      $region17: #{multi_head_attention.4} parent=15 // pred_check
        %p159 = pneg %p50
      $region18: #{multi_head_attention.4} parent=15 // pred_check_branch
        %161 = sbr.rel (%p159) target = $region20
      $region19: #{multi_head_attention.4} parent=15 // pred_region
        %p162 = scmp.lt.s32.totalorder %s16, 1
        %s163 = scalar_select %p162, %s16, 1
        %p164 = scmp.lt.s32.totalorder %s17, 0
        %s165 = scalar_select %p164, %s17, 0
        %s166 = smul.addr %s163, 4
        %s167 = sadd.s32 %s165, %s166
        %s168 = smul.addr %s167, 4
        %s169 = scalar_lea.vmem %s0, %s168
      $region20: #{multi_head_attention.4} parent=15 // pred_fallthru
        _
      // Predicated region
      $region21: #{multi_head_attention.4} parent=15 // pred_check
        %p170 = pneg %p78
      $region22: #{multi_head_attention.4} parent=15 // pred_check_branch
        %172 = sbr.rel (%p170) target = $region24
      $region23: #{multi_head_attention.4} parent=15 // pred_region
        %p173 = scmp.lt.s32.totalorder %s16, 1
        %s174 = scalar_select %p173, %s16, 1
        %p175 = scmp.lt.s32.totalorder %s18, 0
        %s176 = scalar_select %p175, %s18, 0
        %s177 = smul.addr %s174, 4
        %s178 = sadd.s32 %s176, %s177
        %s179 = smul.addr %s178, 4
        %s180 = scalar_lea.vmem %s1, %s179
      $region24: #{multi_head_attention.4} parent=15 // pred_fallthru
        _
      // Predicated region
      $region25: #{multi_head_attention.4} parent=15 // pred_check
        %p181 = pneg %p106
      $region26: #{multi_head_attention.4} parent=15 // pred_check_branch
        %183 = sbr.rel (%p181) target = $region28
      $region27: #{multi_head_attention.4} parent=15 // pred_region
        %p184 = scmp.lt.s32.totalorder %s16, 1
        %s185 = scalar_select %p184, %s16, 1
        %p186 = scmp.lt.s32.totalorder %s18, 0
        %s187 = scalar_select %p186, %s18, 0
        %s188 = smul.addr %s185, 4
        %s189 = sadd.s32 %s187, %s188
        %s190 = smul.addr %s189, 4
        %s191 = scalar_lea.vmem %s2, %s190
      $region28: #{multi_head_attention.4} parent=15 // pred_fallthru
        _
    $region16: #{multi_head_attention.4} parent=5 // pred_fallthru
      _
    %p192 = scmp.le.s32.totalorder 1, %s9
    %p193 = scmp.lt.s32.totalorder %s9, 3
    %p194 = pnand %p192, %p193
    %p195 = pneg %p194
    // Predicated region
    $region29: #{multi_head_attention.4} parent=5 // pred_check
      _
    $region30: #{multi_head_attention.4} parent=5 // pred_check_branch
      %197 = sbr.rel (%p194) target = $region32
    $region31: #{multi_head_attention.4} parent=5 // pred_region
      %s198 = ssub.s32 %s9, 1
      %p199 = scmp.lt.s32.totalorder %s19, 1
      %s200 = scalar_select %p199, %s19, 1
      %p201 = scmp.lt.s32.totalorder %s20, 0
      %s202 = scalar_select %p201, %s20, 0
      %s203 = smul.addr %s200, 4
      %s204 = sadd.s32 %s202, %s203
      %s205 = smul.addr %s204, 4
      %s206 = scalar_lea.vmem %s0, %s205
      %p207 = pneg %p56
      %p208 = pneg %p53
      %p209 = scmp.lt.s32.totalorder %s19, 1
      %s210 = scalar_select %p209, %s19, 1
      %p211 = scmp.lt.s32.totalorder %s21, 0
      %s212 = scalar_select %p211, %s21, 0
      %s213 = smul.addr %s210, 4
      %s214 = sadd.s32 %s212, %s213
      %s215 = smul.addr %s214, 4
      %s216 = scalar_lea.vmem %s1, %s215
      %p217 = pneg %p84
      %p218 = pneg %p81
      %p219 = scmp.lt.s32.totalorder %s19, 1
      %s220 = scalar_select %p219, %s19, 1
      %p221 = scmp.lt.s32.totalorder %s21, 0
      %s222 = scalar_select %p221, %s21, 0
      %s223 = smul.addr %s220, 4
      %s224 = sadd.s32 %s222, %s223
      %s225 = smul.addr %s224, 4
      %s226 = scalar_lea.vmem %s2, %s225
      %p227 = pneg %p112
      %p228 = pneg %p109
      %p229 = pneg %p140
      %p230 = pneg %p137
      %p231 = scmp.lt.s32.totalorder %s19, 1
      %s232 = scalar_select %p231, %s19, 1
      %p233 = scmp.lt.s32.totalorder %s20, 0
      %s234 = scalar_select %p233, %s20, 0
      %s235 = smul.addr %s232, 4
      %s236 = sadd.s32 %s234, %s235
      %s237 = smul.addr %s236, 4
      %s238 = scalar_lea.vmem %s3, %s237
      %p239 = scmp.lt.s32.totalorder %s19, 1
      %s240 = scalar_select %p239, %s19, 1
      %p241 = scmp.lt.s32.totalorder %s20, 0
      %s242 = scalar_select %p241, %s20, 0
      %s243 = smul.addr %s240, 4
      %s244 = sadd.s32 %s242, %s243
      %s245 = smul.addr %s244, 4
      %s246 = scalar_lea.vmem %s0, %s245
      %p247 = scmp.lt.s32.totalorder %s19, 1
      %s248 = scalar_select %p247, %s19, 1
      %p249 = scmp.lt.s32.totalorder %s21, 0
      %s250 = scalar_select %p249, %s21, 0
      %s251 = smul.addr %s248, 4
      %s252 = sadd.s32 %s250, %s251
      %s253 = smul.addr %s252, 4
      %s254 = scalar_lea.vmem %s1, %s253
      %p255 = scmp.lt.s32.totalorder %s19, 1
      %s256 = scalar_select %p255, %s19, 1
      %p257 = scmp.lt.s32.totalorder %s21, 0
      %s258 = scalar_select %p257, %s21, 0
      %s259 = smul.addr %s256, 4
      %s260 = sadd.s32 %s258, %s259
      %s261 = smul.addr %s260, 4
      %s262 = scalar_lea.vmem %s2, %s261
      %p263 = scmp.lt.s32.totalorder %s19, 1
      %s264 = scalar_select %p263, %s19, 1
      %p265 = scmp.lt.s32.totalorder %s20, 0
      %s266 = scalar_select %p265, %s20, 0
      %s267 = smul.addr %s264, 4
      %s268 = sadd.s32 %s266, %s267
      %s269 = smul.addr %s268, 4
      %s270 = scalar_lea.vmem %s3, %s269
      %p273 = scmp.eq.s32.totalorder %s21, 0
      // Predicated region
      $region33: #{multi_head_attention.4} parent=31 // pred_check
        %p274 = pneg %p273
      $region34: #{multi_head_attention.4} parent=31 // pred_check_branch
        %276 = sbr.rel (%p274) target = $region36
      $region35: #{multi_head_attention.4} parent=31 // pred_region
        %vm277 = vcmask 7168
        %278 = vst.msk [vmem:[#allocation2] sm:$0xff] %vm277, -inf
        %279 = vst.msk [vmem:[#allocation2 + $0x8] sm:$0xff] %vm277, -inf
        %280 = vst.msk [vmem:[#allocation2 + $0x10] sm:$0xff] %vm277, -inf
        %281 = vst.msk [vmem:[#allocation2 + $0x18] sm:$0xff] %vm277, -inf
        %282 = vst.msk [vmem:[#allocation3] sm:$0xff] %vm277, 0.0
        %283 = vst.msk [vmem:[#allocation3 + $0x8] sm:$0xff] %vm277, 0.0
        %284 = vst.msk [vmem:[#allocation3 + $0x10] sm:$0xff] %vm277, 0.0
        %285 = vst.msk [vmem:[#allocation3 + $0x18] sm:$0xff] %vm277, 0.0
        %vm286 = vcmask 64512
        %287 = vst.msk [vmem:[#allocation4] sm:$0xff] %vm286, 0.0
        %288 = vst.msk [vmem:[#allocation4 + $0x8] sm:$0xff] %vm286, 0.0
        %289 = vst.msk [vmem:[#allocation4 + $0x10] sm:$0xff] %vm286, 0.0
        %290 = vst.msk [vmem:[#allocation4 + $0x18] sm:$0xff] %vm286, 0.0
      $region36: #{multi_head_attention.4} parent=31 // pred_fallthru
        _
      %v291 = vld [vmem:[%s246] sm:$0xf]
      %v292 = vld [vmem:[%s246 + $0x4] sm:$0xf]
      %v293 = vld [vmem:[%s246 + $0x8] sm:$0xf]
      %v294 = vld [vmem:[%s246 + $0xc] sm:$0xf]
      %v295 = vmul.bf16 %v291, 1052065461
      %v296 = vmul.bf16 %v292, 1052065461
      %v297 = vmul.bf16 %v293, 1052065461
      %v298 = vmul.bf16 %v294, 1052065461
      %v299 = vld [vmem:[%s254] sm:$0xf]
      %v300 = vld [vmem:[%s254 + $0x4] sm:$0xf]
      %v301 = vld [vmem:[%s254 + $0x8] sm:$0xf]
      %v302 = vld [vmem:[%s254 + $0xc] sm:$0xf]
      %v303 = vld [vmem:[%s262] sm:$0xf]
      %v304 = vld [vmem:[%s262 + $0x4] sm:$0xf]
      %v305 = vld [vmem:[%s262 + $0x8] sm:$0xf]
      %v306 = vld [vmem:[%s262 + $0xc] sm:$0xf]
      %vm307 = vcmask 64512
      %v309 = vsel %vm307, %v295, 0
      %v312 = vsel %vm307, %v299, 0
      %314 = vmatprep.subr.bf16.mxu0 0
      %315 = vmatpush1.bf16.xpose.msra.mxu0 0
      %316 = vmatprep.subr.bf16.mxu0 0
      %317 = vmatpush1.bf16.xpose.msra.mxu0 0
      %318 = vmatprep.subr.bf16.mxu0 0
      %319 = vmatpush1.bf16.xpose.msra.mxu0 0
      %320 = vmatprep.subr.bf16.mxu0 0
      %321 = vmatpush1.bf16.xpose.msra.mxu0 0
      %322 = vmatprep.subr.bf16.mxu0 0
      %323 = vmatpush1.bf16.xpose.msra.mxu0 0
      %324 = vmatprep.subr.bf16.mxu0 0
      %325 = vmatpush1.bf16.xpose.msra.mxu0 0
      %326 = vmatprep.subr.bf16.mxu0 0
      %327 = vmatpush1.bf16.xpose.msra.mxu0 0
      %328 = vmatprep.subr.bf16.mxu0 0
      %329 = vmatpush1.bf16.xpose.msra.mxu0 %v312
      %330 = vmatprep.subr.bf16.mxu0 0
      %331 = vmatpush2.bf16.xpose.msra.mxu0 0
      %332 = vmatprep.subr.bf16.mxu0 0
      %333 = vmatpush2.bf16.xpose.msra.mxu0 0
      %334 = vmatprep.subr.bf16.mxu0 0
      %335 = vmatpush2.bf16.xpose.msra.mxu0 0
      %336 = vmatprep.subr.bf16.mxu0 0
      %337 = vmatpush2.bf16.xpose.msra.mxu0 0
      %338 = vmatprep.subr.bf16.mxu0 0
      %339 = vmatpush2.bf16.xpose.msra.mxu0 0
      %340 = vmatprep.subr.bf16.mxu0 0
      %341 = vmatpush2.bf16.xpose.msra.mxu0 0
      %342 = vmatprep.subr.bf16.mxu0 0
      %343 = vmatpush2.bf16.xpose.msra.mxu0 0
      %344 = vmatprep.subr.bf16.mxu0 0
      %345 = vmatpush2.bf16.xpose.msra.mxu0 0
      %346 = vmatprep.mubr.bf16.mxu0 0
      %347 = vmatmul.mubr.bf16.gmra.mxu0 %v309
      %v348 = vpop.f32.mrf.mxu0
      %v349 = vadd.f32 0.0, %v348
      %v350 = vpop.f32.mrf.mxu0
      %v351 = vpop.f32.mrf.mxu0
      %v352 = vpop.f32.mrf.mxu0
      %353 = vdwg.mxu0
      %v355 = vsel %vm307, %v296, 0
      %v358 = vsel %vm307, %v300, 0
      %360 = vmatprep.subr.bf16.mxu0 0
      %361 = vmatpush1.bf16.xpose.msra.mxu0 0
      %362 = vmatprep.subr.bf16.mxu0 0
      %363 = vmatpush1.bf16.xpose.msra.mxu0 0
      %364 = vmatprep.subr.bf16.mxu0 0
      %365 = vmatpush1.bf16.xpose.msra.mxu0 0
      %366 = vmatprep.subr.bf16.mxu0 0
      %367 = vmatpush1.bf16.xpose.msra.mxu0 0
      %368 = vmatprep.subr.bf16.mxu0 0
      %369 = vmatpush1.bf16.xpose.msra.mxu0 0
      %370 = vmatprep.subr.bf16.mxu0 0
      %371 = vmatpush1.bf16.xpose.msra.mxu0 0
      %372 = vmatprep.subr.bf16.mxu0 0
      %373 = vmatpush1.bf16.xpose.msra.mxu0 0
      %374 = vmatprep.subr.bf16.mxu0 0
      %375 = vmatpush1.bf16.xpose.msra.mxu0 %v358
      %376 = vmatprep.subr.bf16.mxu0 0
      %377 = vmatpush2.bf16.xpose.msra.mxu0 0
      %378 = vmatprep.subr.bf16.mxu0 0
      %379 = vmatpush2.bf16.xpose.msra.mxu0 0
      %380 = vmatprep.subr.bf16.mxu0 0
      %381 = vmatpush2.bf16.xpose.msra.mxu0 0
      %382 = vmatprep.subr.bf16.mxu0 0
      %383 = vmatpush2.bf16.xpose.msra.mxu0 0
      %384 = vmatprep.subr.bf16.mxu0 0
      %385 = vmatpush2.bf16.xpose.msra.mxu0 0
      %386 = vmatprep.subr.bf16.mxu0 0
      %387 = vmatpush2.bf16.xpose.msra.mxu0 0
      %388 = vmatprep.subr.bf16.mxu0 0
      %389 = vmatpush2.bf16.xpose.msra.mxu0 0
      %390 = vmatprep.subr.bf16.mxu0 0
      %391 = vmatpush2.bf16.xpose.msra.mxu0 0
      %392 = vmatprep.mubr.bf16.mxu0 0
      %393 = vmatmul.mubr.bf16.gmra.mxu0 %v355
      %v394 = vpop.f32.mrf.mxu0
      %v395 = vadd.f32 0.0, %v394
      %v396 = vpop.f32.mrf.mxu0
      %v397 = vpop.f32.mrf.mxu0
      %v398 = vpop.f32.mrf.mxu0
      %399 = vdwg.mxu0
      %v401 = vsel %vm307, %v297, 0
      %v404 = vsel %vm307, %v301, 0
      %406 = vmatprep.subr.bf16.mxu0 0
      %407 = vmatpush1.bf16.xpose.msra.mxu0 0
      %408 = vmatprep.subr.bf16.mxu0 0
      %409 = vmatpush1.bf16.xpose.msra.mxu0 0
      %410 = vmatprep.subr.bf16.mxu0 0
      %411 = vmatpush1.bf16.xpose.msra.mxu0 0
      %412 = vmatprep.subr.bf16.mxu0 0
      %413 = vmatpush1.bf16.xpose.msra.mxu0 0
      %414 = vmatprep.subr.bf16.mxu0 0
      %415 = vmatpush1.bf16.xpose.msra.mxu0 0
      %416 = vmatprep.subr.bf16.mxu0 0
      %417 = vmatpush1.bf16.xpose.msra.mxu0 0
      %418 = vmatprep.subr.bf16.mxu0 0
      %419 = vmatpush1.bf16.xpose.msra.mxu0 0
      %420 = vmatprep.subr.bf16.mxu0 0
      %421 = vmatpush1.bf16.xpose.msra.mxu0 %v404
      %422 = vmatprep.subr.bf16.mxu0 0
      %423 = vmatpush2.bf16.xpose.msra.mxu0 0
      %424 = vmatprep.subr.bf16.mxu0 0
      %425 = vmatpush2.bf16.xpose.msra.mxu0 0
      %426 = vmatprep.subr.bf16.mxu0 0
      %427 = vmatpush2.bf16.xpose.msra.mxu0 0
      %428 = vmatprep.subr.bf16.mxu0 0
      %429 = vmatpush2.bf16.xpose.msra.mxu0 0
      %430 = vmatprep.subr.bf16.mxu0 0
      %431 = vmatpush2.bf16.xpose.msra.mxu0 0
      %432 = vmatprep.subr.bf16.mxu0 0
      %433 = vmatpush2.bf16.xpose.msra.mxu0 0
      %434 = vmatprep.subr.bf16.mxu0 0
      %435 = vmatpush2.bf16.xpose.msra.mxu0 0
      %436 = vmatprep.subr.bf16.mxu0 0
      %437 = vmatpush2.bf16.xpose.msra.mxu0 0
      %438 = vmatprep.mubr.bf16.mxu0 0
      %439 = vmatmul.mubr.bf16.gmra.mxu0 %v401
      %v440 = vpop.f32.mrf.mxu0
      %v441 = vadd.f32 0.0, %v440
      %v442 = vpop.f32.mrf.mxu0
      %v443 = vpop.f32.mrf.mxu0
      %v444 = vpop.f32.mrf.mxu0
      %445 = vdwg.mxu0
      %v447 = vsel %vm307, %v298, 0
      %v450 = vsel %vm307, %v302, 0
      %452 = vmatprep.subr.bf16.mxu0 0
      %453 = vmatpush1.bf16.xpose.msra.mxu0 0
      %454 = vmatprep.subr.bf16.mxu0 0
      %455 = vmatpush1.bf16.xpose.msra.mxu0 0
      %456 = vmatprep.subr.bf16.mxu0 0
      %457 = vmatpush1.bf16.xpose.msra.mxu0 0
      %458 = vmatprep.subr.bf16.mxu0 0
      %459 = vmatpush1.bf16.xpose.msra.mxu0 0
      %460 = vmatprep.subr.bf16.mxu0 0
      %461 = vmatpush1.bf16.xpose.msra.mxu0 0
      %462 = vmatprep.subr.bf16.mxu0 0
      %463 = vmatpush1.bf16.xpose.msra.mxu0 0
      %464 = vmatprep.subr.bf16.mxu0 0
      %465 = vmatpush1.bf16.xpose.msra.mxu0 0
      %466 = vmatprep.subr.bf16.mxu0 0
      %467 = vmatpush1.bf16.xpose.msra.mxu0 %v450
      %468 = vmatprep.subr.bf16.mxu0 0
      %469 = vmatpush2.bf16.xpose.msra.mxu0 0
      %470 = vmatprep.subr.bf16.mxu0 0
      %471 = vmatpush2.bf16.xpose.msra.mxu0 0
      %472 = vmatprep.subr.bf16.mxu0 0
      %473 = vmatpush2.bf16.xpose.msra.mxu0 0
      %474 = vmatprep.subr.bf16.mxu0 0
      %475 = vmatpush2.bf16.xpose.msra.mxu0 0
      %476 = vmatprep.subr.bf16.mxu0 0
      %477 = vmatpush2.bf16.xpose.msra.mxu0 0
      %478 = vmatprep.subr.bf16.mxu0 0
      %479 = vmatpush2.bf16.xpose.msra.mxu0 0
      %480 = vmatprep.subr.bf16.mxu0 0
      %481 = vmatpush2.bf16.xpose.msra.mxu0 0
      %482 = vmatprep.subr.bf16.mxu0 0
      %483 = vmatpush2.bf16.xpose.msra.mxu0 0
      %484 = vmatprep.mubr.bf16.mxu0 0
      %485 = vmatmul.mubr.bf16.gmra.mxu0 %v447
      %v486 = vpop.f32.mrf.mxu0
      %v487 = vadd.f32 0.0, %v486
      %v488 = vpop.f32.mrf.mxu0
      %v489 = vpop.f32.mrf.mxu0
      %v490 = vpop.f32.mrf.mxu0
      %491 = vdwg.mxu0
      %v492 = vld [vmem:[#allocation2] sm:$0xff]
      %v493 = vld [vmem:[#allocation2 + $0x8] sm:$0xff]
      %v494 = vld [vmem:[#allocation2 + $0x10] sm:$0xff]
      %v495 = vld [vmem:[#allocation2 + $0x18] sm:$0xff]
      %v496 = vsel %vm307, %v349, -inf
      %497 = vmax.xlane.f32.xlu0 %v496
      %v498 = vpop.xlane.xlu0 %497
      %v499 = vsel %vm307, %v395, -inf
      %500 = vmax.xlane.f32.xlu0 %v499
      %v501 = vpop.xlane.xlu0 %500
      %v502 = vsel %vm307, %v441, -inf
      %503 = vmax.xlane.f32.xlu0 %v502
      %v504 = vpop.xlane.xlu0 %503
      %v505 = vsel %vm307, %v487, -inf
      %506 = vmax.xlane.f32.xlu0 %v505
      %v507 = vpop.xlane.xlu0 %506
      %v508 = vmax.f32 %v492, %v498
      %v509 = vmax.f32 %v493, %v501
      %v510 = vmax.f32 %v494, %v504
      %v511 = vmax.f32 %v495, %v507
      %v512 = vsub.f32 %v492, %v508
      %v513 = vsub.f32 %v493, %v509
      %v514 = vsub.f32 %v494, %v510
      %v515 = vsub.f32 %v495, %v511
      %v516 = vmul.f32 %v512, 1.442695
      %v517 = vpow.pop %v516
      %v518 = vmul.f32 %v513, 1.442695
      %v519 = vpow.pop %v518
      %v520 = vmul.f32 %v514, 1.442695
      %v521 = vpow.pop %v520
      %v522 = vmul.f32 %v515, 1.442695
      %v523 = vpow.pop %v522
      %525 = vset.pattern.permute.xlu0 0
      %526 = vperm.xlu0 %525, %v508
      %v527 = vpop.permute.xlu0 %526
      %530 = vset.pattern.permute.xlu0 0
      %531 = vperm.xlu0 %530, %v509
      %v532 = vpop.permute.xlu0 %531
      %535 = vset.pattern.permute.xlu0 0
      %536 = vperm.xlu0 %535, %v510
      %v537 = vpop.permute.xlu0 %536
      %540 = vset.pattern.permute.xlu0 0
      %541 = vperm.xlu0 %540, %v511
      %v542 = vpop.permute.xlu0 %541
      %v544 = vsub.f32 %v349, %v527
      %v545 = vsub.f32 %v395, %v532
      %v546 = vsub.f32 %v441, %v537
      %v547 = vsub.f32 %v487, %v542
      %v548 = vmul.f32 %v544, 1.442695
      %v549 = vpow.pop %v548
      %v550 = vmul.f32 %v545, 1.442695
      %v551 = vpow.pop %v550
      %v552 = vmul.f32 %v546, 1.442695
      %v553 = vpow.pop %v552
      %v554 = vmul.f32 %v547, 1.442695
      %v555 = vpow.pop %v554
      %v556 = vld [vmem:[#allocation3] sm:$0xff]
      %v557 = vld [vmem:[#allocation3 + $0x8] sm:$0xff]
      %v558 = vld [vmem:[#allocation3 + $0x10] sm:$0xff]
      %v559 = vld [vmem:[#allocation3 + $0x18] sm:$0xff]
      %v560 = vmul.f32 %v517, %v556
      %v561 = vmul.f32 %v519, %v557
      %v562 = vmul.f32 %v521, %v558
      %v563 = vmul.f32 %v523, %v559
      %v564 = vsel %vm307, %v549, 0.0
      %565 = vadd.xlane.f32.xlu0 %v564
      %v566 = vpop.xlane.xlu0 %565
      %v567 = vsel %vm307, %v551, 0.0
      %568 = vadd.xlane.f32.xlu0 %v567
      %v569 = vpop.xlane.xlu0 %568
      %v570 = vsel %vm307, %v553, 0.0
      %571 = vadd.xlane.f32.xlu0 %v570
      %v572 = vpop.xlane.xlu0 %571
      %v573 = vsel %vm307, %v555, 0.0
      %574 = vadd.xlane.f32.xlu0 %v573
      %v575 = vpop.xlane.xlu0 %574
      %v576 = vadd.f32 %v560, %v566
      %v577 = vadd.f32 %v561, %v569
      %v578 = vadd.f32 %v562, %v572
      %v579 = vadd.f32 %v563, %v575
      %vm580 = vcmask 7168
      %581 = vst.msk [vmem:[#allocation3] sm:$0xff] %vm580, %v576
      %582 = vst.msk [vmem:[#allocation3 + $0x8] sm:$0xff] %vm580, %v577
      %583 = vst.msk [vmem:[#allocation3 + $0x10] sm:$0xff] %vm580, %v578
      %584 = vst.msk [vmem:[#allocation3 + $0x18] sm:$0xff] %vm580, %v579
      %v585 = vld [vmem:[#allocation4] sm:$0xff]
      %v586 = vld [vmem:[#allocation4 + $0x8] sm:$0xff]
      %v587 = vld [vmem:[#allocation4 + $0x10] sm:$0xff]
      %v588 = vld [vmem:[#allocation4 + $0x18] sm:$0xff]
      %590 = vset.pattern.permute.xlu0 0
      %591 = vperm.xlu0 %590, %v517
      %v592 = vpop.permute.xlu0 %591
      %595 = vset.pattern.permute.xlu0 0
      %596 = vperm.xlu0 %595, %v519
      %v597 = vpop.permute.xlu0 %596
      %600 = vset.pattern.permute.xlu0 0
      %601 = vperm.xlu0 %600, %v521
      %v602 = vpop.permute.xlu0 %601
      %605 = vset.pattern.permute.xlu0 0
      %606 = vperm.xlu0 %605, %v523
      %v607 = vpop.permute.xlu0 %606
      %v609 = vmul.f32 %v592, %v585
      %v610 = vmul.f32 %v597, %v586
      %v611 = vmul.f32 %v602, %v587
      %v612 = vmul.f32 %v607, %v588
      %v613 = vpack.c.bf16 %v549, %v549
      %v614 = vpack.c.bf16 %v551, %v551
      %v615 = vpack.c.bf16 %v553, %v553
      %v616 = vpack.c.bf16 %v555, %v555
      %v618 = vsel %vm307, %v613, 0
      %vm620 = vcmask 1043456
      %v622 = vsel %vm620, %v303, 0
      %624 = vmatprep.subr.bf16.mxu0 0
      %625 = vmatpush1.bf16.msra.mxu0 0
      %626 = vmatprep.subr.bf16.mxu0 0
      %627 = vmatpush1.bf16.msra.mxu0 0
      %628 = vmatprep.subr.bf16.mxu0 0
      %629 = vmatpush1.bf16.msra.mxu0 0
      %630 = vmatprep.subr.bf16.mxu0 0
      %631 = vmatpush1.bf16.msra.mxu0 0
      %632 = vmatprep.subr.bf16.mxu0 0
      %633 = vmatpush1.bf16.msra.mxu0 0
      %634 = vmatprep.subr.bf16.mxu0 0
      %635 = vmatpush1.bf16.msra.mxu0 0
      %636 = vmatprep.subr.bf16.mxu0 0
      %637 = vmatpush1.bf16.msra.mxu0 0
      %638 = vmatprep.subr.bf16.mxu0 0
      %639 = vmatpush1.bf16.msra.mxu0 %v622
      %640 = vmatprep.subr.bf16.mxu0 0
      %641 = vmatpush2.bf16.msra.mxu0 0
      %642 = vmatprep.subr.bf16.mxu0 0
      %643 = vmatpush2.bf16.msra.mxu0 0
      %644 = vmatprep.subr.bf16.mxu0 0
      %645 = vmatpush2.bf16.msra.mxu0 0
      %646 = vmatprep.subr.bf16.mxu0 0
      %647 = vmatpush2.bf16.msra.mxu0 0
      %648 = vmatprep.subr.bf16.mxu0 0
      %649 = vmatpush2.bf16.msra.mxu0 0
      %650 = vmatprep.subr.bf16.mxu0 0
      %651 = vmatpush2.bf16.msra.mxu0 0
      %652 = vmatprep.subr.bf16.mxu0 0
      %653 = vmatpush2.bf16.msra.mxu0 0
      %654 = vmatprep.subr.bf16.mxu0 0
      %655 = vmatpush2.bf16.msra.mxu0 0
      %656 = vmatprep.mubr.bf16.mxu0 0
      %657 = vmatmul.mubr.bf16.gmra.mxu0 %v618
      %v658 = vpop.f32.mrf.mxu0
      %v659 = vadd.f32 0.0, %v658
      %v660 = vpop.f32.mrf.mxu0
      %v661 = vpop.f32.mrf.mxu0
      %v662 = vpop.f32.mrf.mxu0
      %663 = vdwg.mxu0
      %v665 = vsel %vm307, %v614, 0
      %v668 = vsel %vm620, %v304, 0
      %670 = vmatprep.subr.bf16.mxu0 0
      %671 = vmatpush1.bf16.msra.mxu0 0
      %672 = vmatprep.subr.bf16.mxu0 0
      %673 = vmatpush1.bf16.msra.mxu0 0
      %674 = vmatprep.subr.bf16.mxu0 0
      %675 = vmatpush1.bf16.msra.mxu0 0
      %676 = vmatprep.subr.bf16.mxu0 0
      %677 = vmatpush1.bf16.msra.mxu0 0
      %678 = vmatprep.subr.bf16.mxu0 0
      %679 = vmatpush1.bf16.msra.mxu0 0
      %680 = vmatprep.subr.bf16.mxu0 0
      %681 = vmatpush1.bf16.msra.mxu0 0
      %682 = vmatprep.subr.bf16.mxu0 0
      %683 = vmatpush1.bf16.msra.mxu0 0
      %684 = vmatprep.subr.bf16.mxu0 0
      %685 = vmatpush1.bf16.msra.mxu0 %v668
      %686 = vmatprep.subr.bf16.mxu0 0
      %687 = vmatpush2.bf16.msra.mxu0 0
      %688 = vmatprep.subr.bf16.mxu0 0
      %689 = vmatpush2.bf16.msra.mxu0 0
      %690 = vmatprep.subr.bf16.mxu0 0
      %691 = vmatpush2.bf16.msra.mxu0 0
      %692 = vmatprep.subr.bf16.mxu0 0
      %693 = vmatpush2.bf16.msra.mxu0 0
      %694 = vmatprep.subr.bf16.mxu0 0
      %695 = vmatpush2.bf16.msra.mxu0 0
      %696 = vmatprep.subr.bf16.mxu0 0
      %697 = vmatpush2.bf16.msra.mxu0 0
      %698 = vmatprep.subr.bf16.mxu0 0
      %699 = vmatpush2.bf16.msra.mxu0 0
      %700 = vmatprep.subr.bf16.mxu0 0
      %701 = vmatpush2.bf16.msra.mxu0 0
      %702 = vmatprep.mubr.bf16.mxu0 0
      %703 = vmatmul.mubr.bf16.gmra.mxu0 %v665
      %v704 = vpop.f32.mrf.mxu0
      %v705 = vadd.f32 0.0, %v704
      %v706 = vpop.f32.mrf.mxu0
      %v707 = vpop.f32.mrf.mxu0
      %v708 = vpop.f32.mrf.mxu0
      %709 = vdwg.mxu0
      %v711 = vsel %vm307, %v615, 0
      %v714 = vsel %vm620, %v305, 0
      %716 = vmatprep.subr.bf16.mxu0 0
      %717 = vmatpush1.bf16.msra.mxu0 0
      %718 = vmatprep.subr.bf16.mxu0 0
      %719 = vmatpush1.bf16.msra.mxu0 0
      %720 = vmatprep.subr.bf16.mxu0 0
      %721 = vmatpush1.bf16.msra.mxu0 0
      %722 = vmatprep.subr.bf16.mxu0 0
      %723 = vmatpush1.bf16.msra.mxu0 0
      %724 = vmatprep.subr.bf16.mxu0 0
      %725 = vmatpush1.bf16.msra.mxu0 0
      %726 = vmatprep.subr.bf16.mxu0 0
      %727 = vmatpush1.bf16.msra.mxu0 0
      %728 = vmatprep.subr.bf16.mxu0 0
      %729 = vmatpush1.bf16.msra.mxu0 0
      %730 = vmatprep.subr.bf16.mxu0 0
      %731 = vmatpush1.bf16.msra.mxu0 %v714
      %732 = vmatprep.subr.bf16.mxu0 0
      %733 = vmatpush2.bf16.msra.mxu0 0
      %734 = vmatprep.subr.bf16.mxu0 0
      %735 = vmatpush2.bf16.msra.mxu0 0
      %736 = vmatprep.subr.bf16.mxu0 0
      %737 = vmatpush2.bf16.msra.mxu0 0
      %738 = vmatprep.subr.bf16.mxu0 0
      %739 = vmatpush2.bf16.msra.mxu0 0
      %740 = vmatprep.subr.bf16.mxu0 0
      %741 = vmatpush2.bf16.msra.mxu0 0
      %742 = vmatprep.subr.bf16.mxu0 0
      %743 = vmatpush2.bf16.msra.mxu0 0
      %744 = vmatprep.subr.bf16.mxu0 0
      %745 = vmatpush2.bf16.msra.mxu0 0
      %746 = vmatprep.subr.bf16.mxu0 0
      %747 = vmatpush2.bf16.msra.mxu0 0
      %748 = vmatprep.mubr.bf16.mxu0 0
      %749 = vmatmul.mubr.bf16.gmra.mxu0 %v711
      %v750 = vpop.f32.mrf.mxu0
      %v751 = vadd.f32 0.0, %v750
      %v752 = vpop.f32.mrf.mxu0
      %v753 = vpop.f32.mrf.mxu0
      %v754 = vpop.f32.mrf.mxu0
      %755 = vdwg.mxu0
      %v757 = vsel %vm307, %v616, 0
      %v760 = vsel %vm620, %v306, 0
      %762 = vmatprep.subr.bf16.mxu0 0
      %763 = vmatpush1.bf16.msra.mxu0 0
      %764 = vmatprep.subr.bf16.mxu0 0
      %765 = vmatpush1.bf16.msra.mxu0 0
      %766 = vmatprep.subr.bf16.mxu0 0
      %767 = vmatpush1.bf16.msra.mxu0 0
      %768 = vmatprep.subr.bf16.mxu0 0
      %769 = vmatpush1.bf16.msra.mxu0 0
      %770 = vmatprep.subr.bf16.mxu0 0
      %771 = vmatpush1.bf16.msra.mxu0 0
      %772 = vmatprep.subr.bf16.mxu0 0
      %773 = vmatpush1.bf16.msra.mxu0 0
      %774 = vmatprep.subr.bf16.mxu0 0
      %775 = vmatpush1.bf16.msra.mxu0 0
      %776 = vmatprep.subr.bf16.mxu0 0
      %777 = vmatpush1.bf16.msra.mxu0 %v760
      %778 = vmatprep.subr.bf16.mxu0 0
      %779 = vmatpush2.bf16.msra.mxu0 0
      %780 = vmatprep.subr.bf16.mxu0 0
      %781 = vmatpush2.bf16.msra.mxu0 0
      %782 = vmatprep.subr.bf16.mxu0 0
      %783 = vmatpush2.bf16.msra.mxu0 0
      %784 = vmatprep.subr.bf16.mxu0 0
      %785 = vmatpush2.bf16.msra.mxu0 0
      %786 = vmatprep.subr.bf16.mxu0 0
      %787 = vmatpush2.bf16.msra.mxu0 0
      %788 = vmatprep.subr.bf16.mxu0 0
      %789 = vmatpush2.bf16.msra.mxu0 0
      %790 = vmatprep.subr.bf16.mxu0 0
      %791 = vmatpush2.bf16.msra.mxu0 0
      %792 = vmatprep.subr.bf16.mxu0 0
      %793 = vmatpush2.bf16.msra.mxu0 0
      %794 = vmatprep.mubr.bf16.mxu0 0
      %795 = vmatmul.mubr.bf16.gmra.mxu0 %v757
      %v796 = vpop.f32.mrf.mxu0
      %v797 = vadd.f32 0.0, %v796
      %v798 = vpop.f32.mrf.mxu0
      %v799 = vpop.f32.mrf.mxu0
      %v800 = vpop.f32.mrf.mxu0
      %801 = vdwg.mxu0
      %v802 = vadd.f32 %v609, %v659
      %v803 = vadd.f32 %v610, %v705
      %v804 = vadd.f32 %v611, %v751
      %v805 = vadd.f32 %v612, %v797
      %806 = vst.msk [vmem:[#allocation4] sm:$0xff] %vm307, %v802
      %807 = vst.msk [vmem:[#allocation4 + $0x8] sm:$0xff] %vm307, %v803
      %808 = vst.msk [vmem:[#allocation4 + $0x10] sm:$0xff] %vm307, %v804
      %809 = vst.msk [vmem:[#allocation4 + $0x18] sm:$0xff] %vm307, %v805
      %810 = vst.msk [vmem:[#allocation2] sm:$0xff] %vm580, %v508
      %811 = vst.msk [vmem:[#allocation2 + $0x8] sm:$0xff] %vm580, %v509
      %812 = vst.msk [vmem:[#allocation2 + $0x10] sm:$0xff] %vm580, %v510
      %813 = vst.msk [vmem:[#allocation2 + $0x18] sm:$0xff] %vm580, %v511
      // Predicated region
      $region37: #{multi_head_attention.4} parent=31 // pred_check
        %p814 = pneg %p273
      $region38: #{multi_head_attention.4} parent=31 // pred_check_branch
        %816 = sbr.rel (%p814) target = $region40
      $region39: #{multi_head_attention.4} parent=31 // pred_region
        %v817 = vld [vmem:[#allocation4] sm:$0xff]
        %v818 = vld [vmem:[#allocation4 + $0x8] sm:$0xff]
        %v819 = vld [vmem:[#allocation4 + $0x10] sm:$0xff]
        %v820 = vld [vmem:[#allocation4 + $0x18] sm:$0xff]
        %v821 = vld [vmem:[#allocation3] sm:$0xff]
        %v822 = vld [vmem:[#allocation3 + $0x8] sm:$0xff]
        %v823 = vld [vmem:[#allocation3 + $0x10] sm:$0xff]
        %v824 = vld [vmem:[#allocation3 + $0x18] sm:$0xff]
        %v825 = vrcp.pop %v821
        %v826 = vrcp.pop %v822
        %v827 = vrcp.pop %v823
        %v828 = vrcp.pop %v824
        %830 = vset.pattern.permute.xlu0 0
        %831 = vperm.xlu0 %830, %v825
        %v832 = vpop.permute.xlu0 %831
        %835 = vset.pattern.permute.xlu0 0
        %836 = vperm.xlu0 %835, %v826
        %v837 = vpop.permute.xlu0 %836
        %840 = vset.pattern.permute.xlu0 0
        %841 = vperm.xlu0 %840, %v827
        %v842 = vpop.permute.xlu0 %841
        %845 = vset.pattern.permute.xlu0 0
        %846 = vperm.xlu0 %845, %v828
        %v847 = vpop.permute.xlu0 %846
        %v849 = vmul.f32 %v817, %v832
        %v850 = vmul.f32 %v818, %v837
        %v851 = vmul.f32 %v819, %v842
        %v852 = vmul.f32 %v820, %v847
        %v853 = vpack.c.bf16 %v849, %v849
        %v854 = vpack.c.bf16 %v850, %v850
        %v855 = vpack.c.bf16 %v851, %v851
        %v856 = vpack.c.bf16 %v852, %v852
        %vm857 = vcmask 60416
        %858 = vst.msk [vmem:[%s270] sm:$0xf] %vm857, %v853
        %859 = vst.msk [vmem:[%s270 + $0x4] sm:$0xf] %vm857, %v854
        %860 = vst.msk [vmem:[%s270 + $0x8] sm:$0xf] %vm857, %v855
        %861 = vst.msk [vmem:[%s270 + $0xc] sm:$0xf] %vm857, %v856
      $region40: #{multi_head_attention.4} parent=31 // pred_fallthru
        _
      %p862 = scmp.lt.s32.totalorder %s19, 1
      %s863 = scalar_select %p862, %s19, 1
      %p864 = scmp.lt.s32.totalorder %s20, 0
      %s865 = scalar_select %p864, %s20, 0
      %s866 = smul.addr %s863, 4
      %s867 = sadd.s32 %s865, %s866
      %s868 = smul.addr %s867, 4
      %s869 = scalar_lea.vmem %s3, %s868
      // Predicated region
      $region41: #{multi_head_attention.4} parent=31 // pred_check
        %p870 = pneg %p137
      $region42: #{multi_head_attention.4} parent=31 // pred_check_branch
        %872 = sbr.rel (%p870) target = $region44
      $region43: #{multi_head_attention.4} parent=31 // pred_region
        _
      $region44: #{multi_head_attention.4} parent=31 // pred_fallthru
        _
    $region32: #{multi_head_attention.4} parent=5 // pred_fallthru
      _
    %p873 = scmp.le.s32.totalorder 2, %s9
    // Predicated region
    $region45: #{multi_head_attention.4} parent=5 // pred_check
      %p874 = pneg %p873
    $region46: #{multi_head_attention.4} parent=5 // pred_check_branch
      %876 = sbr.rel (%p874) target = $region48
    $region47: #{multi_head_attention.4} parent=5 // pred_region
      %s877 = ssub.s32 %s9, 2
      // Predicated region
      $region49: #{multi_head_attention.4} parent=47 // pred_check
        %p878 = pneg %p143
      $region50: #{multi_head_attention.4} parent=47 // pred_check_branch
        %880 = sbr.rel (%p878) target = $region52
      $region51: #{multi_head_attention.4} parent=47 // pred_region
        %p881 = scmp.lt.s32.totalorder %s22, 1
        %s882 = scalar_select %p881, %s22, 1
        %p883 = scmp.lt.s32.totalorder %s23, 0
        %s884 = scalar_select %p883, %s23, 0
        %s885 = smul.addr %s882, 4
        %s886 = sadd.s32 %s884, %s885
        %s887 = smul.addr %s886, 4
        %s888 = scalar_lea.vmem %s3, %s887
      $region52: #{multi_head_attention.4} parent=47 // pred_fallthru
        _
    $region48: #{multi_head_attention.4} parent=5 // pred_fallthru
      _
  $region6: #{multi_head_attention.4} parent=0 // loop_footer
    %s13 = sadd.s32 1, %s9
  $region7: #{multi_head_attention.4} parent=0 // loop_footer_branch
    %8 = sbr.rel target = $region3
  $region8: #{multi_head_attention.4} parent=0 // loop_exit
    _

</llo_original>
